<compile_context>
chip_gen: v7x
topology: tpu7x:2x2x1
jax: 0.10.0
libtpu: 0.0.40
codegen_flags: <defaults>
</compile_context>

<pallas_src>
import jax
import jax.numpy as jnp
from jax.experimental import pallas as pl
from jax.experimental.pallas import tpu as pltpu

EPS = 1e-5


def seg_head_kernel(scale_ref, shift_ref, w_ref, b_ref, x_ref, o_ref, ypad_ref):
    # scale_ref: (Cin,)            SMEM  fused BN scale = gamma * rsqrt(var+eps)
    # shift_ref: (Cin,)            SMEM  fused BN shift = beta - mean*scale
    # w_ref:     (Cout*Cin*9,)     SMEM  conv weight, flattened OIHW
    # b_ref:     (Cout,)           SMEM  conv bias
    # x_ref:     (1, Cin, H, W)    VMEM  full image for batch element n
    # o_ref:     (1, Cout, TH, W)  VMEM  output row-tile (lane-dense on W)
    # ypad_ref:  (Cin, TH+2, W+2)  VMEM  scratch: zero-padded BN/ReLU tile
    _, Cin, _, W = x_ref.shape
    _, Cout, TH, _ = o_ref.shape
    h = pl.program_id(1)
    nh = pl.num_programs(1)

    def bn_relu(v, ci):
        # BN-apply as one multiply-add (stats pre-fused in the wrapper) + ReLU.
        return jnp.maximum(v * scale_ref[ci] + shift_ref[ci], 0.0)

    # Zero only the 1-pixel left/right halo columns (not the whole scratch).
    # Done every tile so nothing relies on scratch persistence across cores.
    ypad_ref[:, :, 0:1] = jnp.zeros((Cin, TH + 2, 1), jnp.float32)
    ypad_ref[:, :, W + 1:W + 2] = jnp.zeros((Cin, TH + 2, 1), jnp.float32)

    # Interior rows of this output tile.
    row0 = pl.multiple_of(h * TH, TH)
    for ci in range(Cin):
        xin = x_ref[0, ci, pl.ds(row0, TH), :]                 # (TH, W)
        ypad_ref[ci, 1:TH + 1, 1:W + 1] = bn_relu(xin, ci)

    # Top halo row (zero at the image border, else BN/ReLU of the row above).
    @pl.when(h == 0)
    def _():
        ypad_ref[:, 0:1, 1:W + 1] = jnp.zeros((Cin, 1, W), jnp.float32)

    @pl.when(h > 0)
    def _():
        for ci in range(Cin):
            xr = x_ref[0, ci, pl.ds(h * TH - 1, 1), :]         # (1, W)
            ypad_ref[ci, 0:1, 1:W + 1] = bn_relu(xr, ci)

    # Bottom halo row.
    @pl.when(h == nh - 1)
    def _():
        ypad_ref[:, TH + 1:TH + 2, 1:W + 1] = jnp.zeros((Cin, 1, W), jnp.float32)

    @pl.when(h < nh - 1)
    def _():
        for ci in range(Cin):
            xr = x_ref[0, ci, pl.ds(h * TH + TH, 1), :]        # (1, W)
            ypad_ref[ci, TH + 1:TH + 2, 1:W + 1] = bn_relu(xr, ci)

    # 3x3 conv as shifted VPU multiply-adds (W on lanes), scalar weights from
    # SMEM; bias added once per output channel (no per-tap broadcasts).
    accs = [jnp.full((TH, W), b_ref[co], jnp.float32) for co in range(Cout)]
    for ci in range(Cin):
        for kh in range(3):
            for kw in range(3):
                patch = ypad_ref[ci, kh:kh + TH, kw:kw + W]    # (TH, W)
                for co in range(Cout):
                    wv = w_ref[(co * Cin + ci) * 9 + kh * 3 + kw]
                    accs[co] = accs[co] + wv * patch
    for co in range(Cout):
        o_ref[0, co, :, :] = accs[co].astype(o_ref.dtype)


def segmentation_head_2d(x_nchw, gamma, beta, w_oihw, bias, *, th=8):
    """x_nchw: (N, Cin, H, W).  Returns (N, Cout, H, W), matching PyTorch."""
    N, Cin, H, W = x_nchw.shape
    Cout = w_oihw.shape[0]

    x = x_nchw.astype(jnp.float32)

    # --- BN batch statistics hoisted out of the fused kernel: cheap channel
    #     reduction here, pre-fused into per-channel scale/shift so the kernel
    #     applies BN with one FMA per element and can be tiled freely. ---
    mean = jnp.mean(x, axis=(0, 2, 3))
    var = jnp.mean(jnp.square(x - mean.reshape(1, Cin, 1, 1)), axis=(0, 2, 3))
    scale = gamma.astype(jnp.float32) * jax.lax.rsqrt(var + EPS)
    shift = beta.astype(jnp.float32) - mean * scale

    w_flat = w_oihw.astype(jnp.float32).reshape(Cout * Cin * 9)
    b = bias.astype(jnp.float32).reshape(Cout)

    if H % th != 0 or th % 8 != 0:
        th = H  # fall back to a single row-tile
    grid = (N, H // th)

    out = pl.pallas_call(
        seg_head_kernel,
        out_shape=jax.ShapeDtypeStruct((N, Cout, H, W), jnp.float32),
        grid_spec=pltpu.PrefetchScalarGridSpec(
            num_scalar_prefetch=4,          # scale, shift, w_flat, bias -> SMEM
            grid=grid,
            in_specs=[
                # Full image per batch element; block index is constant across
                # the h axis so it is fetched once per n and reused.
                pl.BlockSpec((1, Cin, H, W), lambda n, h, *_: (n, 0, 0, 0)),
            ],
            out_specs=pl.BlockSpec((1, Cout, th, W),
                                   lambda n, h, *_: (n, 0, h, 0)),
            scratch_shapes=[pltpu.VMEM((Cin, th + 2, W + 2), jnp.float32)],
        ),
        compiler_params=pltpu.CompilerParams(
            dimension_semantics=("parallel", "arbitrary")),
    )(scale, shift, w_flat, b, x)
    return out


def reference(x_nchw, gamma, beta, w_oihw, bias):
    """Pure-JAX reference matching PyTorch BN(train) -> ReLU -> Conv3x3."""
    mean = jnp.mean(x_nchw, axis=(0, 2, 3), keepdims=True)
    var = jnp.mean((x_nchw - mean) ** 2, axis=(0, 2, 3), keepdims=True)
    y = (x_nchw - mean) / jnp.sqrt(var + EPS)
    y = y * gamma.reshape(1, -1, 1, 1) + beta.reshape(1, -1, 1, 1)
    y = jnp.maximum(y, 0.0)
    out = jax.lax.conv_general_dilated(
        y, w_oihw, window_strides=(1, 1), padding="SAME",
        dimension_numbers=("NCHW", "OIHW", "NCHW"))
    return out + bias.reshape(1, -1, 1, 1)


if __name__ == "__main__":
    # Small shapes consistent with the module.
    N, Cin, H, W = 2, 4, 16, 16
    Cout = 3  # number_classes

    key = jax.random.PRNGKey(0)
    kx, kw, kb = jax.random.split(key, 3)

    x = jax.random.normal(kx, (N, Cin, H, W), dtype=jnp.float32)

    # Conv2d weight: kaiming_normal_ -> std = sqrt(2 / fan_in), fan_in = Cin*3*3
    fan_in = Cin * 3 * 3
    w_oihw = jax.random.normal(kw, (Cout, Cin, 3, 3), jnp.float32) * jnp.sqrt(2.0 / fan_in)
    # Conv2d bias: default PyTorch init uniform(-1/sqrt(fan_in), 1/sqrt(fan_in))
    bound = 1.0 / jnp.sqrt(fan_in)
    bias = jax.random.uniform(kb, (Cout,), jnp.float32, -bound, bound)

    # BatchNorm2d params per _init_weight: weight=1, bias=0
    gamma = jnp.ones((Cin,), jnp.float32)
    beta = jnp.zeros((Cin,), jnp.float32)

    out = segmentation_head_2d(x, gamma, beta, w_oihw, bias, th=8)
    out = jax.block_until_ready(out)

    ref = reference(x, gamma, beta, w_oihw, bias)
    assert out.shape == (N, Cout, H, W)
    err = float(jnp.max(jnp.abs(out - ref)))
    assert jnp.allclose(out, ref, atol=1e-4, rtol=1e-4), err

    print("KERNEL_OK")
</pallas_src>

<mosaic_0001>
module attributes {stable_mosaic.version = 11 : i64} {
  func.func @seg_head_kernel(%arg0: i32, %arg1: i32, %arg2: memref<4xf32, #tpu.memory_space<smem>>, %arg3: memref<4xf32, #tpu.memory_space<smem>>, %arg4: memref<108xf32, #tpu.memory_space<smem>>, %arg5: memref<3xf32, #tpu.memory_space<smem>>, %arg6: memref<1x4x16x16xf32, #tpu.memory_space<vmem>>, %arg7: memref<1x3x8x16xf32, #tpu.memory_space<vmem>>, %arg8: memref<4x10x18xf32, #tpu.memory_space<vmem>>) attributes {dimension_semantics = [#tpu.dimension_semantics<parallel>, #tpu.dimension_semantics<arbitrary>], iteration_bounds = array<i64: 2, 2>, scalar_prefetch = 4 : i64, scratch_operands = 1 : i64, tpu.core_type = #tpu.core_type<tc>, window_params = [{transform_indices = @transform_0, window_bounds = array<i64: 1, 4, 16, 16>}, {transform_indices = @transform_1, window_bounds = array<i64: 1, 3, 8, 16>}]} {
    %cst = arith.constant 0.000000e+00 : f32
    %0 = vector.broadcast %cst : f32 to vector<4x10x1xf32>
    %c0 = arith.constant 0 : index
    %c0_0 = arith.constant 0 : index
    %c0_1 = arith.constant 0 : index
    %1 = vector.load %arg8[%c0, %c0_0, %c0_1] : memref<4x10x18xf32, #tpu.memory_space<vmem>>, vector<4x10x1xf32>
    tpu.vector_store %arg8[%c0, %c0_0, %c0_1], %0 {strides = array<i32>} : memref<4x10x18xf32, #tpu.memory_space<vmem>>, vector<4x10x1xf32>,
    %cst_2 = arith.constant 0.000000e+00 : f32
    %2 = vector.broadcast %cst_2 : f32 to vector<4x10x1xf32>
    %c0_3 = arith.constant 0 : index
    %c0_4 = arith.constant 0 : index
    %c17 = arith.constant 17 : index
    %3 = vector.load %arg8[%c0_3, %c0_4, %c17] : memref<4x10x18xf32, #tpu.memory_space<vmem>>, vector<4x10x1xf32>
    tpu.vector_store %arg8[%c0_3, %c0_4, %c17], %2 {strides = array<i32>} : memref<4x10x18xf32, #tpu.memory_space<vmem>>, vector<4x10x1xf32>,
    %c8_i32 = arith.constant 8 : i32
    %4 = arith.muli %arg1, %c8_i32 : i32
    %5 = tpu.assume_multiple %4, 8 : i32
    %c0_5 = arith.constant 0 : index
    %c0_6 = arith.constant 0 : index
    %6 = arith.index_cast %5 : i32 to index
    %c0_7 = arith.constant 0 : index
    %7 = vector.load %arg6[%c0_5, %c0_6, %6, %c0_7] : memref<1x4x16x16xf32, #tpu.memory_space<vmem>>, vector<1x1x8x16xf32>
    %8 = vector.shape_cast %7 : vector<1x1x8x16xf32> to vector<8x16xf32>
    %c0_8 = arith.constant 0 : index
    %9 = memref.load %arg2[%c0_8] : memref<4xf32, #tpu.memory_space<smem>>
    %10 = vector.broadcast %9 : f32 to vector<8x16xf32>
    %11 = arith.mulf %8, %10 : vector<8x16xf32>
    %c0_9 = arith.constant 0 : index
    %12 = memref.load %arg3[%c0_9] : memref<4xf32, #tpu.memory_space<smem>>
    %13 = vector.broadcast %12 : f32 to vector<8x16xf32>
    %14 = arith.addf %11, %13 : vector<8x16xf32>
    %cst_10 = arith.constant 0.000000e+00 : f32
    %15 = vector.broadcast %cst_10 : f32 to vector<8x16xf32>
    %16 = arith.maximumf %14, %15 : vector<8x16xf32>
    %c0_11 = arith.constant 0 : index
    %c1 = arith.constant 1 : index
    %c1_12 = arith.constant 1 : index
    %17 = vector.load %arg8[%c0_11, %c1, %c1_12] : memref<4x10x18xf32, #tpu.memory_space<vmem>>, vector<1x8x16xf32>
    %18 = vector.shape_cast %17 : vector<1x8x16xf32> to vector<8x16xf32>
    %19 = vector.shape_cast %16 : vector<8x16xf32> to vector<1x8x16xf32>
    tpu.vector_store %arg8[%c0_11, %c1, %c1_12], %19 {strides = array<i32>} : memref<4x10x18xf32, #tpu.memory_space<vmem>>, vector<1x8x16xf32>,
    %c0_13 = arith.constant 0 : index
    %c1_14 = arith.constant 1 : index
    %20 = arith.index_cast %5 : i32 to index
    %c0_15 = arith.constant 0 : index
    %21 = vector.load %arg6[%c0_13, %c1_14, %20, %c0_15] : memref<1x4x16x16xf32, #tpu.memory_space<vmem>>, vector<1x1x8x16xf32>
    %22 = vector.shape_cast %21 : vector<1x1x8x16xf32> to vector<8x16xf32>
    %c1_16 = arith.constant 1 : index
    %23 = memref.load %arg2[%c1_16] : memref<4xf32, #tpu.memory_space<smem>>
    %24 = vector.broadcast %23 : f32 to vector<8x16xf32>
    %25 = arith.mulf %22, %24 : vector<8x16xf32>
    %c1_17 = arith.constant 1 : index
    %26 = memref.load %arg3[%c1_17] : memref<4xf32, #tpu.memory_space<smem>>
    %27 = vector.broadcast %26 : f32 to vector<8x16xf32>
    %28 = arith.addf %25, %27 : vector<8x16xf32>
    %cst_18 = arith.constant 0.000000e+00 : f32
    %29 = vector.broadcast %cst_18 : f32 to vector<8x16xf32>
    %30 = arith.maximumf %28, %29 : vector<8x16xf32>
    %c1_19 = arith.constant 1 : index
    %c1_20 = arith.constant 1 : index
    %c1_21 = arith.constant 1 : index
    %31 = vector.load %arg8[%c1_19, %c1_20, %c1_21] : memref<4x10x18xf32, #tpu.memory_space<vmem>>, vector<1x8x16xf32>
    %32 = vector.shape_cast %31 : vector<1x8x16xf32> to vector<8x16xf32>
    %33 = vector.shape_cast %30 : vector<8x16xf32> to vector<1x8x16xf32>
    tpu.vector_store %arg8[%c1_19, %c1_20, %c1_21], %33 {strides = array<i32>} : memref<4x10x18xf32, #tpu.memory_space<vmem>>, vector<1x8x16xf32>,
    %c0_22 = arith.constant 0 : index
    %c2 = arith.constant 2 : index
    %34 = arith.index_cast %5 : i32 to index
    %c0_23 = arith.constant 0 : index
    %35 = vector.load %arg6[%c0_22, %c2, %34, %c0_23] : memref<1x4x16x16xf32, #tpu.memory_space<vmem>>, vector<1x1x8x16xf32>
    %36 = vector.shape_cast %35 : vector<1x1x8x16xf32> to vector<8x16xf32>
    %c2_24 = arith.constant 2 : index
    %37 = memref.load %arg2[%c2_24] : memref<4xf32, #tpu.memory_space<smem>>
    %38 = vector.broadcast %37 : f32 to vector<8x16xf32>
    %39 = arith.mulf %36, %38 : vector<8x16xf32>
    %c2_25 = arith.constant 2 : index
    %40 = memref.load %arg3[%c2_25] : memref<4xf32, #tpu.memory_space<smem>>
    %41 = vector.broadcast %40 : f32 to vector<8x16xf32>
    %42 = arith.addf %39, %41 : vector<8x16xf32>
    %cst_26 = arith.constant 0.000000e+00 : f32
    %43 = vector.broadcast %cst_26 : f32 to vector<8x16xf32>
    %44 = arith.maximumf %42, %43 : vector<8x16xf32>
    %c2_27 = arith.constant 2 : index
    %c1_28 = arith.constant 1 : index
    %c1_29 = arith.constant 1 : index
    %45 = vector.load %arg8[%c2_27, %c1_28, %c1_29] : memref<4x10x18xf32, #tpu.memory_space<vmem>>, vector<1x8x16xf32>
    %46 = vector.shape_cast %45 : vector<1x8x16xf32> to vector<8x16xf32>
    %47 = vector.shape_cast %44 : vector<8x16xf32> to vector<1x8x16xf32>
    tpu.vector_store %arg8[%c2_27, %c1_28, %c1_29], %47 {strides = array<i32>} : memref<4x10x18xf32, #tpu.memory_space<vmem>>, vector<1x8x16xf32>,
    %c0_30 = arith.constant 0 : index
    %c3 = arith.constant 3 : index
    %48 = arith.index_cast %5 : i32 to index
    %c0_31 = arith.constant 0 : index
    %49 = vector.load %arg6[%c0_30, %c3, %48, %c0_31] : memref<1x4x16x16xf32, #tpu.memory_space<vmem>>, vector<1x1x8x16xf32>
    %50 = vector.shape_cast %49 : vector<1x1x8x16xf32> to vector<8x16xf32>
    %c3_32 = arith.constant 3 : index
    %51 = memref.load %arg2[%c3_32] : memref<4xf32, #tpu.memory_space<smem>>
    %52 = vector.broadcast %51 : f32 to vector<8x16xf32>
    %53 = arith.mulf %50, %52 : vector<8x16xf32>
    %c3_33 = arith.constant 3 : index
    %54 = memref.load %arg3[%c3_33] : memref<4xf32, #tpu.memory_space<smem>>
    %55 = vector.broadcast %54 : f32 to vector<8x16xf32>
    %56 = arith.addf %53, %55 : vector<8x16xf32>
    %cst_34 = arith.constant 0.000000e+00 : f32
    %57 = vector.broadcast %cst_34 : f32 to vector<8x16xf32>
    %58 = arith.maximumf %56, %57 : vector<8x16xf32>
    %c3_35 = arith.constant 3 : index
    %c1_36 = arith.constant 1 : index
    %c1_37 = arith.constant 1 : index
    %59 = vector.load %arg8[%c3_35, %c1_36, %c1_37] : memref<4x10x18xf32, #tpu.memory_space<vmem>>, vector<1x8x16xf32>
    %60 = vector.shape_cast %59 : vector<1x8x16xf32> to vector<8x16xf32>
    %61 = vector.shape_cast %58 : vector<8x16xf32> to vector<1x8x16xf32>
    tpu.vector_store %arg8[%c3_35, %c1_36, %c1_37], %61 {strides = array<i32>} : memref<4x10x18xf32, #tpu.memory_space<vmem>>, vector<1x8x16xf32>,
    %c0_i32 = arith.constant 0 : i32
    %62 = arith.cmpi eq, %arg1, %c0_i32 : i32
    %63 = arith.extui %62 : i1 to i32
    %c0_i32_38 = arith.constant 0 : i32
    %64 = arith.cmpi ne, %63, %c0_i32_38 : i32
    scf.if %64 {
      %cst_172 = arith.constant 0.000000e+00 : f32
      %593 = vector.broadcast %cst_172 : f32 to vector<4x1x16xf32>
      %c0_173 = arith.constant 0 : index
      %c0_174 = arith.constant 0 : index
      %c1_175 = arith.constant 1 : index
      %594 = vector.load %arg8[%c0_173, %c0_174, %c1_175] : memref<4x10x18xf32, #tpu.memory_space<vmem>>, vector<4x1x16xf32>
      tpu.vector_store %arg8[%c0_173, %c0_174, %c1_175], %593 {strides = array<i32>} : memref<4x10x18xf32, #tpu.memory_space<vmem>>, vector<4x1x16xf32>,
    } else {
    }
    %c0_i32_39 = arith.constant 0 : i32
    %65 = arith.cmpi sgt, %arg1, %c0_i32_39 : i32
    %66 = arith.extui %65 : i1 to i32
    %c0_i32_40 = arith.constant 0 : i32
    %67 = arith.cmpi ne, %66, %c0_i32_40 : i32
    scf.if %67 {
      %c8_i32_172 = arith.constant 8 : i32
      %593 = arith.muli %arg1, %c8_i32_172 : i32
      %c1_i32_173 = arith.constant 1 : i32
      %594 = arith.subi %593, %c1_i32_173 : i32
      %c0_174 = arith.constant 0 : index
      %c0_175 = arith.constant 0 : index
      %595 = arith.index_cast %594 : i32 to index
      %c0_176 = arith.constant 0 : index
      %596 = vector.load %arg6[%c0_174, %c0_175, %595, %c0_176] : memref<1x4x16x16xf32, #tpu.memory_space<vmem>>, vector<1x1x1x16xf32>
      %597 = vector.shape_cast %596 : vector<1x1x1x16xf32> to vector<1x16xf32>
      %c0_177 = arith.constant 0 : index
      %598 = memref.load %arg2[%c0_177] : memref<4xf32, #tpu.memory_space<smem>>
      %599 = vector.broadcast %598 : f32 to vector<1x16xf32>
      %600 = arith.mulf %597, %599 : vector<1x16xf32>
      %c0_178 = arith.constant 0 : index
      %601 = memref.load %arg3[%c0_178] : memref<4xf32, #tpu.memory_space<smem>>
      %602 = vector.broadcast %601 : f32 to vector<1x16xf32>
      %603 = arith.addf %600, %602 : vector<1x16xf32>
      %cst_179 = arith.constant 0.000000e+00 : f32
      %604 = vector.broadcast %cst_179 : f32 to vector<1x16xf32>
      %605 = arith.maximumf %603, %604 : vector<1x16xf32>
      %c0_180 = arith.constant 0 : index
      %c0_181 = arith.constant 0 : index
      %c1_182 = arith.constant 1 : index
      %606 = vector.load %arg8[%c0_180, %c0_181, %c1_182] : memref<4x10x18xf32, #tpu.memory_space<vmem>>, vector<1x1x16xf32>
      %607 = vector.shape_cast %606 : vector<1x1x16xf32> to vector<1x16xf32>
      %608 = vector.shape_cast %605 : vector<1x16xf32> to vector<1x1x16xf32>
      tpu.vector_store %arg8[%c0_180, %c0_181, %c1_182], %608 {strides = array<i32>} : memref<4x10x18xf32, #tpu.memory_space<vmem>>, vector<1x1x16xf32>,
      %c8_i32_183 = arith.constant 8 : i32
      %609 = arith.muli %arg1, %c8_i32_183 : i32
      %c1_i32_184 = arith.constant 1 : i32
      %610 = arith.subi %609, %c1_i32_184 : i32
      %c0_185 = arith.constant 0 : index
      %c1_186 = arith.constant 1 : index
      %611 = arith.index_cast %610 : i32 to index
      %c0_187 = arith.constant 0 : index
      %612 = vector.load %arg6[%c0_185, %c1_186, %611, %c0_187] : memref<1x4x16x16xf32, #tpu.memory_space<vmem>>, vector<1x1x1x16xf32>
      %613 = vector.shape_cast %612 : vector<1x1x1x16xf32> to vector<1x16xf32>
      %c1_188 = arith.constant 1 : index
      %614 = memref.load %arg2[%c1_188] : memref<4xf32, #tpu.memory_space<smem>>
      %615 = vector.broadcast %614 : f32 to vector<1x16xf32>
      %616 = arith.mulf %613, %615 : vector<1x16xf32>
      %c1_189 = arith.constant 1 : index
      %617 = memref.load %arg3[%c1_189] : memref<4xf32, #tpu.memory_space<smem>>
      %618 = vector.broadcast %617 : f32 to vector<1x16xf32>
      %619 = arith.addf %616, %618 : vector<1x16xf32>
      %cst_190 = arith.constant 0.000000e+00 : f32
      %620 = vector.broadcast %cst_190 : f32 to vector<1x16xf32>
      %621 = arith.maximumf %619, %620 : vector<1x16xf32>
      %c1_191 = arith.constant 1 : index
      %c0_192 = arith.constant 0 : index
      %c1_193 = arith.constant 1 : index
      %622 = vector.load %arg8[%c1_191, %c0_192, %c1_193] : memref<4x10x18xf32, #tpu.memory_space<vmem>>, vector<1x1x16xf32>
      %623 = vector.shape_cast %622 : vector<1x1x16xf32> to vector<1x16xf32>
      %624 = vector.shape_cast %621 : vector<1x16xf32> to vector<1x1x16xf32>
      tpu.vector_store %arg8[%c1_191, %c0_192, %c1_193], %624 {strides = array<i32>} : memref<4x10x18xf32, #tpu.memory_space<vmem>>, vector<1x1x16xf32>,
      %c8_i32_194 = arith.constant 8 : i32
      %625 = arith.muli %arg1, %c8_i32_194 : i32
      %c1_i32_195 = arith.constant 1 : i32
      %626 = arith.subi %625, %c1_i32_195 : i32
      %c0_196 = arith.constant 0 : index
      %c2_197 = arith.constant 2 : index
      %627 = arith.index_cast %626 : i32 to index
      %c0_198 = arith.constant 0 : index
      %628 = vector.load %arg6[%c0_196, %c2_197, %627, %c0_198] : memref<1x4x16x16xf32, #tpu.memory_space<vmem>>, vector<1x1x1x16xf32>
      %629 = vector.shape_cast %628 : vector<1x1x1x16xf32> to vector<1x16xf32>
      %c2_199 = arith.constant 2 : index
      %630 = memref.load %arg2[%c2_199] : memref<4xf32, #tpu.memory_space<smem>>
      %631 = vector.broadcast %630 : f32 to vector<1x16xf32>
      %632 = arith.mulf %629, %631 : vector<1x16xf32>
      %c2_200 = arith.constant 2 : index
      %633 = memref.load %arg3[%c2_200] : memref<4xf32, #tpu.memory_space<smem>>
      %634 = vector.broadcast %633 : f32 to vector<1x16xf32>
      %635 = arith.addf %632, %634 : vector<1x16xf32>
      %cst_201 = arith.constant 0.000000e+00 : f32
      %636 = vector.broadcast %cst_201 : f32 to vector<1x16xf32>
      %637 = arith.maximumf %635, %636 : vector<1x16xf32>
      %c2_202 = arith.constant 2 : index
      %c0_203 = arith.constant 0 : index
      %c1_204 = arith.constant 1 : index
      %638 = vector.load %arg8[%c2_202, %c0_203, %c1_204] : memref<4x10x18xf32, #tpu.memory_space<vmem>>, vector<1x1x16xf32>
      %639 = vector.shape_cast %638 : vector<1x1x16xf32> to vector<1x16xf32>
      %640 = vector.shape_cast %637 : vector<1x16xf32> to vector<1x1x16xf32>
      tpu.vector_store %arg8[%c2_202, %c0_203, %c1_204], %640 {strides = array<i32>} : memref<4x10x18xf32, #tpu.memory_space<vmem>>, vector<1x1x16xf32>,
      %c8_i32_205 = arith.constant 8 : i32
      %641 = arith.muli %arg1, %c8_i32_205 : i32
      %c1_i32_206 = arith.constant 1 : i32
      %642 = arith.subi %641, %c1_i32_206 : i32
      %c0_207 = arith.constant 0 : index
      %c3_208 = arith.constant 3 : index
      %643 = arith.index_cast %642 : i32 to index
      %c0_209 = arith.constant 0 : index
      %644 = vector.load %arg6[%c0_207, %c3_208, %643, %c0_209] : memref<1x4x16x16xf32, #tpu.memory_space<vmem>>, vector<1x1x1x16xf32>
      %645 = vector.shape_cast %644 : vector<1x1x1x16xf32> to vector<1x16xf32>
      %c3_210 = arith.constant 3 : index
      %646 = memref.load %arg2[%c3_210] : memref<4xf32, #tpu.memory_space<smem>>
      %647 = vector.broadcast %646 : f32 to vector<1x16xf32>
      %648 = arith.mulf %645, %647 : vector<1x16xf32>
      %c3_211 = arith.constant 3 : index
      %649 = memref.load %arg3[%c3_211] : memref<4xf32, #tpu.memory_space<smem>>
      %650 = vector.broadcast %649 : f32 to vector<1x16xf32>
      %651 = arith.addf %648, %650 : vector<1x16xf32>
      %cst_212 = arith.constant 0.000000e+00 : f32
      %652 = vector.broadcast %cst_212 : f32 to vector<1x16xf32>
      %653 = arith.maximumf %651, %652 : vector<1x16xf32>
      %c3_213 = arith.constant 3 : index
      %c0_214 = arith.constant 0 : index
      %c1_215 = arith.constant 1 : index
      %654 = vector.load %arg8[%c3_213, %c0_214, %c1_215] : memref<4x10x18xf32, #tpu.memory_space<vmem>>, vector<1x1x16xf32>
      %655 = vector.shape_cast %654 : vector<1x1x16xf32> to vector<1x16xf32>
      %656 = vector.shape_cast %653 : vector<1x16xf32> to vector<1x1x16xf32>
      tpu.vector_store %arg8[%c3_213, %c0_214, %c1_215], %656 {strides = array<i32>} : memref<4x10x18xf32, #tpu.memory_space<vmem>>, vector<1x1x16xf32>,
    } else {
    }
    %c1_i32 = arith.constant 1 : i32
    %68 = arith.cmpi eq, %arg1, %c1_i32 : i32
    %69 = arith.extui %68 : i1 to i32
    %c0_i32_41 = arith.constant 0 : i32
    %70 = arith.cmpi ne, %69, %c0_i32_41 : i32
    scf.if %70 {
      %cst_172 = arith.constant 0.000000e+00 : f32
      %593 = vector.broadcast %cst_172 : f32 to vector<4x1x16xf32>
      %c0_173 = arith.constant 0 : index
      %c9_174 = arith.constant 9 : index
      %c1_175 = arith.constant 1 : index
      %594 = vector.load %arg8[%c0_173, %c9_174, %c1_175] : memref<4x10x18xf32, #tpu.memory_space<vmem>>, vector<4x1x16xf32>
      tpu.vector_store %arg8[%c0_173, %c9_174, %c1_175], %593 {strides = array<i32>} : memref<4x10x18xf32, #tpu.memory_space<vmem>>, vector<4x1x16xf32>,
    } else {
    }
    %c1_i32_42 = arith.constant 1 : i32
    %71 = arith.cmpi slt, %arg1, %c1_i32_42 : i32
    %72 = arith.extui %71 : i1 to i32
    %c0_i32_43 = arith.constant 0 : i32
    %73 = arith.cmpi ne, %72, %c0_i32_43 : i32
    scf.if %73 {
      %c8_i32_172 = arith.constant 8 : i32
      %593 = arith.muli %arg1, %c8_i32_172 : i32
      %c8_i32_173 = arith.constant 8 : i32
      %594 = arith.addi %593, %c8_i32_173 : i32
      %c0_174 = arith.constant 0 : index
      %c0_175 = arith.constant 0 : index
      %595 = arith.index_cast %594 : i32 to index
      %c0_176 = arith.constant 0 : index
      %596 = vector.load %arg6[%c0_174, %c0_175, %595, %c0_176] : memref<1x4x16x16xf32, #tpu.memory_space<vmem>>, vector<1x1x1x16xf32>
      %597 = vector.shape_cast %596 : vector<1x1x1x16xf32> to vector<1x16xf32>
      %c0_177 = arith.constant 0 : index
      %598 = memref.load %arg2[%c0_177] : memref<4xf32, #tpu.memory_space<smem>>
      %599 = vector.broadcast %598 : f32 to vector<1x16xf32>
      %600 = arith.mulf %597, %599 : vector<1x16xf32>
      %c0_178 = arith.constant 0 : index
      %601 = memref.load %arg3[%c0_178] : memref<4xf32, #tpu.memory_space<smem>>
      %602 = vector.broadcast %601 : f32 to vector<1x16xf32>
      %603 = arith.addf %600, %602 : vector<1x16xf32>
      %cst_179 = arith.constant 0.000000e+00 : f32
      %604 = vector.broadcast %cst_179 : f32 to vector<1x16xf32>
      %605 = arith.maximumf %603, %604 : vector<1x16xf32>
      %c0_180 = arith.constant 0 : index
      %c9_181 = arith.constant 9 : index
      %c1_182 = arith.constant 1 : index
      %606 = vector.load %arg8[%c0_180, %c9_181, %c1_182] : memref<4x10x18xf32, #tpu.memory_space<vmem>>, vector<1x1x16xf32>
      %607 = vector.shape_cast %606 : vector<1x1x16xf32> to vector<1x16xf32>
      %608 = vector.shape_cast %605 : vector<1x16xf32> to vector<1x1x16xf32>
      tpu.vector_store %arg8[%c0_180, %c9_181, %c1_182], %608 {strides = array<i32>} : memref<4x10x18xf32, #tpu.memory_space<vmem>>, vector<1x1x16xf32>,
      %c8_i32_183 = arith.constant 8 : i32
      %609 = arith.muli %arg1, %c8_i32_183 : i32
      %c8_i32_184 = arith.constant 8 : i32
      %610 = arith.addi %609, %c8_i32_184 : i32
      %c0_185 = arith.constant 0 : index
      %c1_186 = arith.constant 1 : index
      %611 = arith.index_cast %610 : i32 to index
      %c0_187 = arith.constant 0 : index
      %612 = vector.load %arg6[%c0_185, %c1_186, %611, %c0_187] : memref<1x4x16x16xf32, #tpu.memory_space<vmem>>, vector<1x1x1x16xf32>
      %613 = vector.shape_cast %612 : vector<1x1x1x16xf32> to vector<1x16xf32>
      %c1_188 = arith.constant 1 : index
      %614 = memref.load %arg2[%c1_188] : memref<4xf32, #tpu.memory_space<smem>>
      %615 = vector.broadcast %614 : f32 to vector<1x16xf32>
      %616 = arith.mulf %613, %615 : vector<1x16xf32>
      %c1_189 = arith.constant 1 : index
      %617 = memref.load %arg3[%c1_189] : memref<4xf32, #tpu.memory_space<smem>>
      %618 = vector.broadcast %617 : f32 to vector<1x16xf32>
      %619 = arith.addf %616, %618 : vector<1x16xf32>
      %cst_190 = arith.constant 0.000000e+00 : f32
      %620 = vector.broadcast %cst_190 : f32 to vector<1x16xf32>
      %621 = arith.maximumf %619, %620 : vector<1x16xf32>
      %c1_191 = arith.constant 1 : index
      %c9_192 = arith.constant 9 : index
      %c1_193 = arith.constant 1 : index
      %622 = vector.load %arg8[%c1_191, %c9_192, %c1_193] : memref<4x10x18xf32, #tpu.memory_space<vmem>>, vector<1x1x16xf32>
      %623 = vector.shape_cast %622 : vector<1x1x16xf32> to vector<1x16xf32>
      %624 = vector.shape_cast %621 : vector<1x16xf32> to vector<1x1x16xf32>
      tpu.vector_store %arg8[%c1_191, %c9_192, %c1_193], %624 {strides = array<i32>} : memref<4x10x18xf32, #tpu.memory_space<vmem>>, vector<1x1x16xf32>,
      %c8_i32_194 = arith.constant 8 : i32
      %625 = arith.muli %arg1, %c8_i32_194 : i32
      %c8_i32_195 = arith.constant 8 : i32
      %626 = arith.addi %625, %c8_i32_195 : i32
      %c0_196 = arith.constant 0 : index
      %c2_197 = arith.constant 2 : index
      %627 = arith.index_cast %626 : i32 to index
      %c0_198 = arith.constant 0 : index
      %628 = vector.load %arg6[%c0_196, %c2_197, %627, %c0_198] : memref<1x4x16x16xf32, #tpu.memory_space<vmem>>, vector<1x1x1x16xf32>
      %629 = vector.shape_cast %628 : vector<1x1x1x16xf32> to vector<1x16xf32>
      %c2_199 = arith.constant 2 : index
      %630 = memref.load %arg2[%c2_199] : memref<4xf32, #tpu.memory_space<smem>>
      %631 = vector.broadcast %630 : f32 to vector<1x16xf32>
      %632 = arith.mulf %629, %631 : vector<1x16xf32>
      %c2_200 = arith.constant 2 : index
      %633 = memref.load %arg3[%c2_200] : memref<4xf32, #tpu.memory_space<smem>>
      %634 = vector.broadcast %633 : f32 to vector<1x16xf32>
      %635 = arith.addf %632, %634 : vector<1x16xf32>
      %cst_201 = arith.constant 0.000000e+00 : f32
      %636 = vector.broadcast %cst_201 : f32 to vector<1x16xf32>
      %637 = arith.maximumf %635, %636 : vector<1x16xf32>
      %c2_202 = arith.constant 2 : index
      %c9_203 = arith.constant 9 : index
      %c1_204 = arith.constant 1 : index
      %638 = vector.load %arg8[%c2_202, %c9_203, %c1_204] : memref<4x10x18xf32, #tpu.memory_space<vmem>>, vector<1x1x16xf32>
      %639 = vector.shape_cast %638 : vector<1x1x16xf32> to vector<1x16xf32>
      %640 = vector.shape_cast %637 : vector<1x16xf32> to vector<1x1x16xf32>
      tpu.vector_store %arg8[%c2_202, %c9_203, %c1_204], %640 {strides = array<i32>} : memref<4x10x18xf32, #tpu.memory_space<vmem>>, vector<1x1x16xf32>,
      %c8_i32_205 = arith.constant 8 : i32
      %641 = arith.muli %arg1, %c8_i32_205 : i32
      %c8_i32_206 = arith.constant 8 : i32
      %642 = arith.addi %641, %c8_i32_206 : i32
      %c0_207 = arith.constant 0 : index
      %c3_208 = arith.constant 3 : index
      %643 = arith.index_cast %642 : i32 to index
      %c0_209 = arith.constant 0 : index
      %644 = vector.load %arg6[%c0_207, %c3_208, %643, %c0_209] : memref<1x4x16x16xf32, #tpu.memory_space<vmem>>, vector<1x1x1x16xf32>
      %645 = vector.shape_cast %644 : vector<1x1x1x16xf32> to vector<1x16xf32>
      %c3_210 = arith.constant 3 : index
      %646 = memref.load %arg2[%c3_210] : memref<4xf32, #tpu.memory_space<smem>>
      %647 = vector.broadcast %646 : f32 to vector<1x16xf32>
      %648 = arith.mulf %645, %647 : vector<1x16xf32>
      %c3_211 = arith.constant 3 : index
      %649 = memref.load %arg3[%c3_211] : memref<4xf32, #tpu.memory_space<smem>>
      %650 = vector.broadcast %649 : f32 to vector<1x16xf32>
      %651 = arith.addf %648, %650 : vector<1x16xf32>
      %cst_212 = arith.constant 0.000000e+00 : f32
      %652 = vector.broadcast %cst_212 : f32 to vector<1x16xf32>
      %653 = arith.maximumf %651, %652 : vector<1x16xf32>
      %c3_213 = arith.constant 3 : index
      %c9_214 = arith.constant 9 : index
      %c1_215 = arith.constant 1 : index
      %654 = vector.load %arg8[%c3_213, %c9_214, %c1_215] : memref<4x10x18xf32, #tpu.memory_space<vmem>>, vector<1x1x16xf32>
      %655 = vector.shape_cast %654 : vector<1x1x16xf32> to vector<1x16xf32>
      %656 = vector.shape_cast %653 : vector<1x16xf32> to vector<1x1x16xf32>
      tpu.vector_store %arg8[%c3_213, %c9_214, %c1_215], %656 {strides = array<i32>} : memref<4x10x18xf32, #tpu.memory_space<vmem>>, vector<1x1x16xf32>,
    } else {
    }
    %c0_44 = arith.constant 0 : index
    %74 = memref.load %arg5[%c0_44] : memref<3xf32, #tpu.memory_space<smem>>
    %75 = vector.broadcast %74 : f32 to vector<8x16xf32>
    %c1_45 = arith.constant 1 : index
    %76 = memref.load %arg5[%c1_45] : memref<3xf32, #tpu.memory_space<smem>>
    %77 = vector.broadcast %76 : f32 to vector<8x16xf32>
    %c2_46 = arith.constant 2 : index
    %78 = memref.load %arg5[%c2_46] : memref<3xf32, #tpu.memory_space<smem>>
    %79 = vector.broadcast %78 : f32 to vector<8x16xf32>
    %c0_47 = arith.constant 0 : index
    %c0_48 = arith.constant 0 : index
    %c0_49 = arith.constant 0 : index
    %80 = vector.load %arg8[%c0_47, %c0_48, %c0_49] : memref<4x10x18xf32, #tpu.memory_space<vmem>>, vector<1x8x16xf32>
    %81 = vector.shape_cast %80 : vector<1x8x16xf32> to vector<8x16xf32>
    %c0_50 = arith.constant 0 : index
    %82 = memref.load %arg4[%c0_50] : memref<108xf32, #tpu.memory_space<smem>>
    %83 = vector.broadcast %82 : f32 to vector<8x16xf32>
    %84 = arith.mulf %83, %81 : vector<8x16xf32>
    %85 = arith.addf %75, %84 : vector<8x16xf32>
    %c36 = arith.constant 36 : index
    %86 = memref.load %arg4[%c36] : memref<108xf32, #tpu.memory_space<smem>>
    %87 = vector.broadcast %86 : f32 to vector<8x16xf32>
    %88 = arith.mulf %87, %81 : vector<8x16xf32>
    %89 = arith.addf %77, %88 : vector<8x16xf32>
    %c72 = arith.constant 72 : index
    %90 = memref.load %arg4[%c72] : memref<108xf32, #tpu.memory_space<smem>>
    %91 = vector.broadcast %90 : f32 to vector<8x16xf32>
    %92 = arith.mulf %91, %81 : vector<8x16xf32>
    %93 = arith.addf %79, %92 : vector<8x16xf32>
    %c0_51 = arith.constant 0 : index
    %c0_52 = arith.constant 0 : index
    %c1_53 = arith.constant 1 : index
    %94 = vector.load %arg8[%c0_51, %c0_52, %c1_53] : memref<4x10x18xf32, #tpu.memory_space<vmem>>, vector<1x8x16xf32>
    %95 = vector.shape_cast %94 : vector<1x8x16xf32> to vector<8x16xf32>
    %c1_54 = arith.constant 1 : index
    %96 = memref.load %arg4[%c1_54] : memref<108xf32, #tpu.memory_space<smem>>
    %97 = vector.broadcast %96 : f32 to vector<8x16xf32>
    %98 = arith.mulf %97, %95 : vector<8x16xf32>
    %99 = arith.addf %85, %98 : vector<8x16xf32>
    %c37 = arith.constant 37 : index
    %100 = memref.load %arg4[%c37] : memref<108xf32, #tpu.memory_space<smem>>
    %101 = vector.broadcast %100 : f32 to vector<8x16xf32>
    %102 = arith.mulf %101, %95 : vector<8x16xf32>
    %103 = arith.addf %89, %102 : vector<8x16xf32>
    %c73 = arith.constant 73 : index
    %104 = memref.load %arg4[%c73] : memref<108xf32, #tpu.memory_space<smem>>
    %105 = vector.broadcast %104 : f32 to vector<8x16xf32>
    %106 = arith.mulf %105, %95 : vector<8x16xf32>
    %107 = arith.addf %93, %106 : vector<8x16xf32>
    %c0_55 = arith.constant 0 : index
    %c0_56 = arith.constant 0 : index
    %c2_57 = arith.constant 2 : index
    %108 = vector.load %arg8[%c0_55, %c0_56, %c2_57] : memref<4x10x18xf32, #tpu.memory_space<vmem>>, vector<1x8x16xf32>
    %109 = vector.shape_cast %108 : vector<1x8x16xf32> to vector<8x16xf32>
    %c2_58 = arith.constant 2 : index
    %110 = memref.load %arg4[%c2_58] : memref<108xf32, #tpu.memory_space<smem>>
    %111 = vector.broadcast %110 : f32 to vector<8x16xf32>
    %112 = arith.mulf %111, %109 : vector<8x16xf32>
    %113 = arith.addf %99, %112 : vector<8x16xf32>
    %c38 = arith.constant 38 : index
    %114 = memref.load %arg4[%c38] : memref<108xf32, #tpu.memory_space<smem>>
    %115 = vector.broadcast %114 : f32 to vector<8x16xf32>
    %116 = arith.mulf %115, %109 : vector<8x16xf32>
    %117 = arith.addf %103, %116 : vector<8x16xf32>
    %c74 = arith.constant 74 : index
    %118 = memref.load %arg4[%c74] : memref<108xf32, #tpu.memory_space<smem>>
    %119 = vector.broadcast %118 : f32 to vector<8x16xf32>
    %120 = arith.mulf %119, %109 : vector<8x16xf32>
    %121 = arith.addf %107, %120 : vector<8x16xf32>
    %c0_59 = arith.constant 0 : index
    %c1_60 = arith.constant 1 : index
    %c0_61 = arith.constant 0 : index
    %122 = vector.load %arg8[%c0_59, %c1_60, %c0_61] : memref<4x10x18xf32, #tpu.memory_space<vmem>>, vector<1x8x16xf32>
    %123 = vector.shape_cast %122 : vector<1x8x16xf32> to vector<8x16xf32>
    %c3_62 = arith.constant 3 : index
    %124 = memref.load %arg4[%c3_62] : memref<108xf32, #tpu.memory_space<smem>>
    %125 = vector.broadcast %124 : f32 to vector<8x16xf32>
    %126 = arith.mulf %125, %123 : vector<8x16xf32>
    %127 = arith.addf %113, %126 : vector<8x16xf32>
    %c39 = arith.constant 39 : index
    %128 = memref.load %arg4[%c39] : memref<108xf32, #tpu.memory_space<smem>>
    %129 = vector.broadcast %128 : f32 to vector<8x16xf32>
    %130 = arith.mulf %129, %123 : vector<8x16xf32>
    %131 = arith.addf %117, %130 : vector<8x16xf32>
    %c75 = arith.constant 75 : index
    %132 = memref.load %arg4[%c75] : memref<108xf32, #tpu.memory_space<smem>>
    %133 = vector.broadcast %132 : f32 to vector<8x16xf32>
    %134 = arith.mulf %133, %123 : vector<8x16xf32>
    %135 = arith.addf %121, %134 : vector<8x16xf32>
    %c0_63 = arith.constant 0 : index
    %c1_64 = arith.constant 1 : index
    %c1_65 = arith.constant 1 : index
    %136 = vector.load %arg8[%c0_63, %c1_64, %c1_65] : memref<4x10x18xf32, #tpu.memory_space<vmem>>, vector<1x8x16xf32>
    %137 = vector.shape_cast %136 : vector<1x8x16xf32> to vector<8x16xf32>
    %c4 = arith.constant 4 : index
    %138 = memref.load %arg4[%c4] : memref<108xf32, #tpu.memory_space<smem>>
    %139 = vector.broadcast %138 : f32 to vector<8x16xf32>
    %140 = arith.mulf %139, %137 : vector<8x16xf32>
    %141 = arith.addf %127, %140 : vector<8x16xf32>
    %c40 = arith.constant 40 : index
    %142 = memref.load %arg4[%c40] : memref<108xf32, #tpu.memory_space<smem>>
    %143 = vector.broadcast %142 : f32 to vector<8x16xf32>
    %144 = arith.mulf %143, %137 : vector<8x16xf32>
    %145 = arith.addf %131, %144 : vector<8x16xf32>
    %c76 = arith.constant 76 : index
    %146 = memref.load %arg4[%c76] : memref<108xf32, #tpu.memory_space<smem>>
    %147 = vector.broadcast %146 : f32 to vector<8x16xf32>
    %148 = arith.mulf %147, %137 : vector<8x16xf32>
    %149 = arith.addf %135, %148 : vector<8x16xf32>
    %c0_66 = arith.constant 0 : index
    %c1_67 = arith.constant 1 : index
    %c2_68 = arith.constant 2 : index
    %150 = vector.load %arg8[%c0_66, %c1_67, %c2_68] : memref<4x10x18xf32, #tpu.memory_space<vmem>>, vector<1x8x16xf32>
    %151 = vector.shape_cast %150 : vector<1x8x16xf32> to vector<8x16xf32>
    %c5 = arith.constant 5 : index
    %152 = memref.load %arg4[%c5] : memref<108xf32, #tpu.memory_space<smem>>
    %153 = vector.broadcast %152 : f32 to vector<8x16xf32>
    %154 = arith.mulf %153, %151 : vector<8x16xf32>
    %155 = arith.addf %141, %154 : vector<8x16xf32>
    %c41 = arith.constant 41 : index
    %156 = memref.load %arg4[%c41] : memref<108xf32, #tpu.memory_space<smem>>
    %157 = vector.broadcast %156 : f32 to vector<8x16xf32>
    %158 = arith.mulf %157, %151 : vector<8x16xf32>
    %159 = arith.addf %145, %158 : vector<8x16xf32>
    %c77 = arith.constant 77 : index
    %160 = memref.load %arg4[%c77] : memref<108xf32, #tpu.memory_space<smem>>
    %161 = vector.broadcast %160 : f32 to vector<8x16xf32>
    %162 = arith.mulf %161, %151 : vector<8x16xf32>
    %163 = arith.addf %149, %162 : vector<8x16xf32>
    %c0_69 = arith.constant 0 : index
    %c2_70 = arith.constant 2 : index
    %c0_71 = arith.constant 0 : index
    %164 = vector.load %arg8[%c0_69, %c2_70, %c0_71] : memref<4x10x18xf32, #tpu.memory_space<vmem>>, vector<1x8x16xf32>
    %165 = vector.shape_cast %164 : vector<1x8x16xf32> to vector<8x16xf32>
    %c6 = arith.constant 6 : index
    %166 = memref.load %arg4[%c6] : memref<108xf32, #tpu.memory_space<smem>>
    %167 = vector.broadcast %166 : f32 to vector<8x16xf32>
    %168 = arith.mulf %167, %165 : vector<8x16xf32>
    %169 = arith.addf %155, %168 : vector<8x16xf32>
    %c42 = arith.constant 42 : index
    %170 = memref.load %arg4[%c42] : memref<108xf32, #tpu.memory_space<smem>>
    %171 = vector.broadcast %170 : f32 to vector<8x16xf32>
    %172 = arith.mulf %171, %165 : vector<8x16xf32>
    %173 = arith.addf %159, %172 : vector<8x16xf32>
    %c78 = arith.constant 78 : index
    %174 = memref.load %arg4[%c78] : memref<108xf32, #tpu.memory_space<smem>>
    %175 = vector.broadcast %174 : f32 to vector<8x16xf32>
    %176 = arith.mulf %175, %165 : vector<8x16xf32>
    %177 = arith.addf %163, %176 : vector<8x16xf32>
    %c0_72 = arith.constant 0 : index
    %c2_73 = arith.constant 2 : index
    %c1_74 = arith.constant 1 : index
    %178 = vector.load %arg8[%c0_72, %c2_73, %c1_74] : memref<4x10x18xf32, #tpu.memory_space<vmem>>, vector<1x8x16xf32>
    %179 = vector.shape_cast %178 : vector<1x8x16xf32> to vector<8x16xf32>
    %c7 = arith.constant 7 : index
    %180 = memref.load %arg4[%c7] : memref<108xf32, #tpu.memory_space<smem>>
    %181 = vector.broadcast %180 : f32 to vector<8x16xf32>
    %182 = arith.mulf %181, %179 : vector<8x16xf32>
    %183 = arith.addf %169, %182 : vector<8x16xf32>
    %c43 = arith.constant 43 : index
    %184 = memref.load %arg4[%c43] : memref<108xf32, #tpu.memory_space<smem>>
    %185 = vector.broadcast %184 : f32 to vector<8x16xf32>
    %186 = arith.mulf %185, %179 : vector<8x16xf32>
    %187 = arith.addf %173, %186 : vector<8x16xf32>
    %c79 = arith.constant 79 : index
    %188 = memref.load %arg4[%c79] : memref<108xf32, #tpu.memory_space<smem>>
    %189 = vector.broadcast %188 : f32 to vector<8x16xf32>
    %190 = arith.mulf %189, %179 : vector<8x16xf32>
    %191 = arith.addf %177, %190 : vector<8x16xf32>
    %c0_75 = arith.constant 0 : index
    %c2_76 = arith.constant 2 : index
    %c2_77 = arith.constant 2 : index
    %192 = vector.load %arg8[%c0_75, %c2_76, %c2_77] : memref<4x10x18xf32, #tpu.memory_space<vmem>>, vector<1x8x16xf32>
    %193 = vector.shape_cast %192 : vector<1x8x16xf32> to vector<8x16xf32>
    %c8 = arith.constant 8 : index
    %194 = memref.load %arg4[%c8] : memref<108xf32, #tpu.memory_space<smem>>
    %195 = vector.broadcast %194 : f32 to vector<8x16xf32>
    %196 = arith.mulf %195, %193 : vector<8x16xf32>
    %197 = arith.addf %183, %196 : vector<8x16xf32>
    %c44 = arith.constant 44 : index
    %198 = memref.load %arg4[%c44] : memref<108xf32, #tpu.memory_space<smem>>
    %199 = vector.broadcast %198 : f32 to vector<8x16xf32>
    %200 = arith.mulf %199, %193 : vector<8x16xf32>
    %201 = arith.addf %187, %200 : vector<8x16xf32>
    %c80 = arith.constant 80 : index
    %202 = memref.load %arg4[%c80] : memref<108xf32, #tpu.memory_space<smem>>
    %203 = vector.broadcast %202 : f32 to vector<8x16xf32>
    %204 = arith.mulf %203, %193 : vector<8x16xf32>
    %205 = arith.addf %191, %204 : vector<8x16xf32>
    %c1_78 = arith.constant 1 : index
    %c0_79 = arith.constant 0 : index
    %c0_80 = arith.constant 0 : index
    %206 = vector.load %arg8[%c1_78, %c0_79, %c0_80] : memref<4x10x18xf32, #tpu.memory_space<vmem>>, vector<1x8x16xf32>
    %207 = vector.shape_cast %206 : vector<1x8x16xf32> to vector<8x16xf32>
    %c9 = arith.constant 9 : index
    %208 = memref.load %arg4[%c9] : memref<108xf32, #tpu.memory_space<smem>>
    %209 = vector.broadcast %208 : f32 to vector<8x16xf32>
    %210 = arith.mulf %209, %207 : vector<8x16xf32>
    %211 = arith.addf %197, %210 : vector<8x16xf32>
    %c45 = arith.constant 45 : index
    %212 = memref.load %arg4[%c45] : memref<108xf32, #tpu.memory_space<smem>>
    %213 = vector.broadcast %212 : f32 to vector<8x16xf32>
    %214 = arith.mulf %213, %207 : vector<8x16xf32>
    %215 = arith.addf %201, %214 : vector<8x16xf32>
    %c81 = arith.constant 81 : index
    %216 = memref.load %arg4[%c81] : memref<108xf32, #tpu.memory_space<smem>>
    %217 = vector.broadcast %216 : f32 to vector<8x16xf32>
    %218 = arith.mulf %217, %207 : vector<8x16xf32>
    %219 = arith.addf %205, %218 : vector<8x16xf32>
    %c1_81 = arith.constant 1 : index
    %c0_82 = arith.constant 0 : index
    %c1_83 = arith.constant 1 : index
    %220 = vector.load %arg8[%c1_81, %c0_82, %c1_83] : memref<4x10x18xf32, #tpu.memory_space<vmem>>, vector<1x8x16xf32>
    %221 = vector.shape_cast %220 : vector<1x8x16xf32> to vector<8x16xf32>
    %c10 = arith.constant 10 : index
    %222 = memref.load %arg4[%c10] : memref<108xf32, #tpu.memory_space<smem>>
    %223 = vector.broadcast %222 : f32 to vector<8x16xf32>
    %224 = arith.mulf %223, %221 : vector<8x16xf32>
    %225 = arith.addf %211, %224 : vector<8x16xf32>
    %c46 = arith.constant 46 : index
    %226 = memref.load %arg4[%c46] : memref<108xf32, #tpu.memory_space<smem>>
    %227 = vector.broadcast %226 : f32 to vector<8x16xf32>
    %228 = arith.mulf %227, %221 : vector<8x16xf32>
    %229 = arith.addf %215, %228 : vector<8x16xf32>
    %c82 = arith.constant 82 : index
    %230 = memref.load %arg4[%c82] : memref<108xf32, #tpu.memory_space<smem>>
    %231 = vector.broadcast %230 : f32 to vector<8x16xf32>
    %232 = arith.mulf %231, %221 : vector<8x16xf32>
    %233 = arith.addf %219, %232 : vector<8x16xf32>
    %c1_84 = arith.constant 1 : index
    %c0_85 = arith.constant 0 : index
    %c2_86 = arith.constant 2 : index
    %234 = vector.load %arg8[%c1_84, %c0_85, %c2_86] : memref<4x10x18xf32, #tpu.memory_space<vmem>>, vector<1x8x16xf32>
    %235 = vector.shape_cast %234 : vector<1x8x16xf32> to vector<8x16xf32>
    %c11 = arith.constant 11 : index
    %236 = memref.load %arg4[%c11] : memref<108xf32, #tpu.memory_space<smem>>
    %237 = vector.broadcast %236 : f32 to vector<8x16xf32>
    %238 = arith.mulf %237, %235 : vector<8x16xf32>
    %239 = arith.addf %225, %238 : vector<8x16xf32>
    %c47 = arith.constant 47 : index
    %240 = memref.load %arg4[%c47] : memref<108xf32, #tpu.memory_space<smem>>
    %241 = vector.broadcast %240 : f32 to vector<8x16xf32>
    %242 = arith.mulf %241, %235 : vector<8x16xf32>
    %243 = arith.addf %229, %242 : vector<8x16xf32>
    %c83 = arith.constant 83 : index
    %244 = memref.load %arg4[%c83] : memref<108xf32, #tpu.memory_space<smem>>
    %245 = vector.broadcast %244 : f32 to vector<8x16xf32>
    %246 = arith.mulf %245, %235 : vector<8x16xf32>
    %247 = arith.addf %233, %246 : vector<8x16xf32>
    %c1_87 = arith.constant 1 : index
    %c1_88 = arith.constant 1 : index
    %c0_89 = arith.constant 0 : index
    %248 = vector.load %arg8[%c1_87, %c1_88, %c0_89] : memref<4x10x18xf32, #tpu.memory_space<vmem>>, vector<1x8x16xf32>
    %249 = vector.shape_cast %248 : vector<1x8x16xf32> to vector<8x16xf32>
    %c12 = arith.constant 12 : index
    %250 = memref.load %arg4[%c12] : memref<108xf32, #tpu.memory_space<smem>>
    %251 = vector.broadcast %250 : f32 to vector<8x16xf32>
    %252 = arith.mulf %251, %249 : vector<8x16xf32>
    %253 = arith.addf %239, %252 : vector<8x16xf32>
    %c48 = arith.constant 48 : index
    %254 = memref.load %arg4[%c48] : memref<108xf32, #tpu.memory_space<smem>>
    %255 = vector.broadcast %254 : f32 to vector<8x16xf32>
    %256 = arith.mulf %255, %249 : vector<8x16xf32>
    %257 = arith.addf %243, %256 : vector<8x16xf32>
    %c84 = arith.constant 84 : index
    %258 = memref.load %arg4[%c84] : memref<108xf32, #tpu.memory_space<smem>>
    %259 = vector.broadcast %258 : f32 to vector<8x16xf32>
    %260 = arith.mulf %259, %249 : vector<8x16xf32>
    %261 = arith.addf %247, %260 : vector<8x16xf32>
    %c1_90 = arith.constant 1 : index
    %c1_91 = arith.constant 1 : index
    %c1_92 = arith.constant 1 : index
    %262 = vector.load %arg8[%c1_90, %c1_91, %c1_92] : memref<4x10x18xf32, #tpu.memory_space<vmem>>, vector<1x8x16xf32>
    %263 = vector.shape_cast %262 : vector<1x8x16xf32> to vector<8x16xf32>
    %c13 = arith.constant 13 : index
    %264 = memref.load %arg4[%c13] : memref<108xf32, #tpu.memory_space<smem>>
    %265 = vector.broadcast %264 : f32 to vector<8x16xf32>
    %266 = arith.mulf %265, %263 : vector<8x16xf32>
    %267 = arith.addf %253, %266 : vector<8x16xf32>
    %c49 = arith.constant 49 : index
    %268 = memref.load %arg4[%c49] : memref<108xf32, #tpu.memory_space<smem>>
    %269 = vector.broadcast %268 : f32 to vector<8x16xf32>
    %270 = arith.mulf %269, %263 : vector<8x16xf32>
    %271 = arith.addf %257, %270 : vector<8x16xf32>
    %c85 = arith.constant 85 : index
    %272 = memref.load %arg4[%c85] : memref<108xf32, #tpu.memory_space<smem>>
    %273 = vector.broadcast %272 : f32 to vector<8x16xf32>
    %274 = arith.mulf %273, %263 : vector<8x16xf32>
    %275 = arith.addf %261, %274 : vector<8x16xf32>
    %c1_93 = arith.constant 1 : index
    %c1_94 = arith.constant 1 : index
    %c2_95 = arith.constant 2 : index
    %276 = vector.load %arg8[%c1_93, %c1_94, %c2_95] : memref<4x10x18xf32, #tpu.memory_space<vmem>>, vector<1x8x16xf32>
    %277 = vector.shape_cast %276 : vector<1x8x16xf32> to vector<8x16xf32>
    %c14 = arith.constant 14 : index
    %278 = memref.load %arg4[%c14] : memref<108xf32, #tpu.memory_space<smem>>
    %279 = vector.broadcast %278 : f32 to vector<8x16xf32>
    %280 = arith.mulf %279, %277 : vector<8x16xf32>
    %281 = arith.addf %267, %280 : vector<8x16xf32>
    %c50 = arith.constant 50 : index
    %282 = memref.load %arg4[%c50] : memref<108xf32, #tpu.memory_space<smem>>
    %283 = vector.broadcast %282 : f32 to vector<8x16xf32>
    %284 = arith.mulf %283, %277 : vector<8x16xf32>
    %285 = arith.addf %271, %284 : vector<8x16xf32>
    %c86 = arith.constant 86 : index
    %286 = memref.load %arg4[%c86] : memref<108xf32, #tpu.memory_space<smem>>
    %287 = vector.broadcast %286 : f32 to vector<8x16xf32>
    %288 = arith.mulf %287, %277 : vector<8x16xf32>
    %289 = arith.addf %275, %288 : vector<8x16xf32>
    %c1_96 = arith.constant 1 : index
    %c2_97 = arith.constant 2 : index
    %c0_98 = arith.constant 0 : index
    %290 = vector.load %arg8[%c1_96, %c2_97, %c0_98] : memref<4x10x18xf32, #tpu.memory_space<vmem>>, vector<1x8x16xf32>
    %291 = vector.shape_cast %290 : vector<1x8x16xf32> to vector<8x16xf32>
    %c15 = arith.constant 15 : index
    %292 = memref.load %arg4[%c15] : memref<108xf32, #tpu.memory_space<smem>>
    %293 = vector.broadcast %292 : f32 to vector<8x16xf32>
    %294 = arith.mulf %293, %291 : vector<8x16xf32>
    %295 = arith.addf %281, %294 : vector<8x16xf32>
    %c51 = arith.constant 51 : index
    %296 = memref.load %arg4[%c51] : memref<108xf32, #tpu.memory_space<smem>>
    %297 = vector.broadcast %296 : f32 to vector<8x16xf32>
    %298 = arith.mulf %297, %291 : vector<8x16xf32>
    %299 = arith.addf %285, %298 : vector<8x16xf32>
    %c87 = arith.constant 87 : index
    %300 = memref.load %arg4[%c87] : memref<108xf32, #tpu.memory_space<smem>>
    %301 = vector.broadcast %300 : f32 to vector<8x16xf32>
    %302 = arith.mulf %301, %291 : vector<8x16xf32>
    %303 = arith.addf %289, %302 : vector<8x16xf32>
    %c1_99 = arith.constant 1 : index
    %c2_100 = arith.constant 2 : index
    %c1_101 = arith.constant 1 : index
    %304 = vector.load %arg8[%c1_99, %c2_100, %c1_101] : memref<4x10x18xf32, #tpu.memory_space<vmem>>, vector<1x8x16xf32>
    %305 = vector.shape_cast %304 : vector<1x8x16xf32> to vector<8x16xf32>
    %c16 = arith.constant 16 : index
    %306 = memref.load %arg4[%c16] : memref<108xf32, #tpu.memory_space<smem>>
    %307 = vector.broadcast %306 : f32 to vector<8x16xf32>
    %308 = arith.mulf %307, %305 : vector<8x16xf32>
    %309 = arith.addf %295, %308 : vector<8x16xf32>
    %c52 = arith.constant 52 : index
    %310 = memref.load %arg4[%c52] : memref<108xf32, #tpu.memory_space<smem>>
    %311 = vector.broadcast %310 : f32 to vector<8x16xf32>
    %312 = arith.mulf %311, %305 : vector<8x16xf32>
    %313 = arith.addf %299, %312 : vector<8x16xf32>
    %c88 = arith.constant 88 : index
    %314 = memref.load %arg4[%c88] : memref<108xf32, #tpu.memory_space<smem>>
    %315 = vector.broadcast %314 : f32 to vector<8x16xf32>
    %316 = arith.mulf %315, %305 : vector<8x16xf32>
    %317 = arith.addf %303, %316 : vector<8x16xf32>
    %c1_102 = arith.constant 1 : index
    %c2_103 = arith.constant 2 : index
    %c2_104 = arith.constant 2 : index
    %318 = vector.load %arg8[%c1_102, %c2_103, %c2_104] : memref<4x10x18xf32, #tpu.memory_space<vmem>>, vector<1x8x16xf32>
    %319 = vector.shape_cast %318 : vector<1x8x16xf32> to vector<8x16xf32>
    %c17_105 = arith.constant 17 : index
    %320 = memref.load %arg4[%c17_105] : memref<108xf32, #tpu.memory_space<smem>>
    %321 = vector.broadcast %320 : f32 to vector<8x16xf32>
    %322 = arith.mulf %321, %319 : vector<8x16xf32>
    %323 = arith.addf %309, %322 : vector<8x16xf32>
    %c53 = arith.constant 53 : index
    %324 = memref.load %arg4[%c53] : memref<108xf32, #tpu.memory_space<smem>>
    %325 = vector.broadcast %324 : f32 to vector<8x16xf32>
    %326 = arith.mulf %325, %319 : vector<8x16xf32>
    %327 = arith.addf %313, %326 : vector<8x16xf32>
    %c89 = arith.constant 89 : index
    %328 = memref.load %arg4[%c89] : memref<108xf32, #tpu.memory_space<smem>>
    %329 = vector.broadcast %328 : f32 to vector<8x16xf32>
    %330 = arith.mulf %329, %319 : vector<8x16xf32>
    %331 = arith.addf %317, %330 : vector<8x16xf32>
    %c2_106 = arith.constant 2 : index
    %c0_107 = arith.constant 0 : index
    %c0_108 = arith.constant 0 : index
    %332 = vector.load %arg8[%c2_106, %c0_107, %c0_108] : memref<4x10x18xf32, #tpu.memory_space<vmem>>, vector<1x8x16xf32>
    %333 = vector.shape_cast %332 : vector<1x8x16xf32> to vector<8x16xf32>
    %c18 = arith.constant 18 : index
    %334 = memref.load %arg4[%c18] : memref<108xf32, #tpu.memory_space<smem>>
    %335 = vector.broadcast %334 : f32 to vector<8x16xf32>
    %336 = arith.mulf %335, %333 : vector<8x16xf32>
    %337 = arith.addf %323, %336 : vector<8x16xf32>
    %c54 = arith.constant 54 : index
    %338 = memref.load %arg4[%c54] : memref<108xf32, #tpu.memory_space<smem>>
    %339 = vector.broadcast %338 : f32 to vector<8x16xf32>
    %340 = arith.mulf %339, %333 : vector<8x16xf32>
    %341 = arith.addf %327, %340 : vector<8x16xf32>
    %c90 = arith.constant 90 : index
    %342 = memref.load %arg4[%c90] : memref<108xf32, #tpu.memory_space<smem>>
    %343 = vector.broadcast %342 : f32 to vector<8x16xf32>
    %344 = arith.mulf %343, %333 : vector<8x16xf32>
    %345 = arith.addf %331, %344 : vector<8x16xf32>
    %c2_109 = arith.constant 2 : index
    %c0_110 = arith.constant 0 : index
    %c1_111 = arith.constant 1 : index
    %346 = vector.load %arg8[%c2_109, %c0_110, %c1_111] : memref<4x10x18xf32, #tpu.memory_space<vmem>>, vector<1x8x16xf32>
    %347 = vector.shape_cast %346 : vector<1x8x16xf32> to vector<8x16xf32>
    %c19 = arith.constant 19 : index
    %348 = memref.load %arg4[%c19] : memref<108xf32, #tpu.memory_space<smem>>
    %349 = vector.broadcast %348 : f32 to vector<8x16xf32>
    %350 = arith.mulf %349, %347 : vector<8x16xf32>
    %351 = arith.addf %337, %350 : vector<8x16xf32>
    %c55 = arith.constant 55 : index
    %352 = memref.load %arg4[%c55] : memref<108xf32, #tpu.memory_space<smem>>
    %353 = vector.broadcast %352 : f32 to vector<8x16xf32>
    %354 = arith.mulf %353, %347 : vector<8x16xf32>
    %355 = arith.addf %341, %354 : vector<8x16xf32>
    %c91 = arith.constant 91 : index
    %356 = memref.load %arg4[%c91] : memref<108xf32, #tpu.memory_space<smem>>
    %357 = vector.broadcast %356 : f32 to vector<8x16xf32>
    %358 = arith.mulf %357, %347 : vector<8x16xf32>
    %359 = arith.addf %345, %358 : vector<8x16xf32>
    %c2_112 = arith.constant 2 : index
    %c0_113 = arith.constant 0 : index
    %c2_114 = arith.constant 2 : index
    %360 = vector.load %arg8[%c2_112, %c0_113, %c2_114] : memref<4x10x18xf32, #tpu.memory_space<vmem>>, vector<1x8x16xf32>
    %361 = vector.shape_cast %360 : vector<1x8x16xf32> to vector<8x16xf32>
    %c20 = arith.constant 20 : index
    %362 = memref.load %arg4[%c20] : memref<108xf32, #tpu.memory_space<smem>>
    %363 = vector.broadcast %362 : f32 to vector<8x16xf32>
    %364 = arith.mulf %363, %361 : vector<8x16xf32>
    %365 = arith.addf %351, %364 : vector<8x16xf32>
    %c56 = arith.constant 56 : index
    %366 = memref.load %arg4[%c56] : memref<108xf32, #tpu.memory_space<smem>>
    %367 = vector.broadcast %366 : f32 to vector<8x16xf32>
    %368 = arith.mulf %367, %361 : vector<8x16xf32>
    %369 = arith.addf %355, %368 : vector<8x16xf32>
    %c92 = arith.constant 92 : index
    %370 = memref.load %arg4[%c92] : memref<108xf32, #tpu.memory_space<smem>>
    %371 = vector.broadcast %370 : f32 to vector<8x16xf32>
    %372 = arith.mulf %371, %361 : vector<8x16xf32>
    %373 = arith.addf %359, %372 : vector<8x16xf32>
    %c2_115 = arith.constant 2 : index
    %c1_116 = arith.constant 1 : index
    %c0_117 = arith.constant 0 : index
    %374 = vector.load %arg8[%c2_115, %c1_116, %c0_117] : memref<4x10x18xf32, #tpu.memory_space<vmem>>, vector<1x8x16xf32>
    %375 = vector.shape_cast %374 : vector<1x8x16xf32> to vector<8x16xf32>
    %c21 = arith.constant 21 : index
    %376 = memref.load %arg4[%c21] : memref<108xf32, #tpu.memory_space<smem>>
    %377 = vector.broadcast %376 : f32 to vector<8x16xf32>
    %378 = arith.mulf %377, %375 : vector<8x16xf32>
    %379 = arith.addf %365, %378 : vector<8x16xf32>
    %c57 = arith.constant 57 : index
    %380 = memref.load %arg4[%c57] : memref<108xf32, #tpu.memory_space<smem>>
    %381 = vector.broadcast %380 : f32 to vector<8x16xf32>
    %382 = arith.mulf %381, %375 : vector<8x16xf32>
    %383 = arith.addf %369, %382 : vector<8x16xf32>
    %c93 = arith.constant 93 : index
    %384 = memref.load %arg4[%c93] : memref<108xf32, #tpu.memory_space<smem>>
    %385 = vector.broadcast %384 : f32 to vector<8x16xf32>
    %386 = arith.mulf %385, %375 : vector<8x16xf32>
    %387 = arith.addf %373, %386 : vector<8x16xf32>
    %c2_118 = arith.constant 2 : index
    %c1_119 = arith.constant 1 : index
    %c1_120 = arith.constant 1 : index
    %388 = vector.load %arg8[%c2_118, %c1_119, %c1_120] : memref<4x10x18xf32, #tpu.memory_space<vmem>>, vector<1x8x16xf32>
    %389 = vector.shape_cast %388 : vector<1x8x16xf32> to vector<8x16xf32>
    %c22 = arith.constant 22 : index
    %390 = memref.load %arg4[%c22] : memref<108xf32, #tpu.memory_space<smem>>
    %391 = vector.broadcast %390 : f32 to vector<8x16xf32>
    %392 = arith.mulf %391, %389 : vector<8x16xf32>
    %393 = arith.addf %379, %392 : vector<8x16xf32>
    %c58 = arith.constant 58 : index
    %394 = memref.load %arg4[%c58] : memref<108xf32, #tpu.memory_space<smem>>
    %395 = vector.broadcast %394 : f32 to vector<8x16xf32>
    %396 = arith.mulf %395, %389 : vector<8x16xf32>
    %397 = arith.addf %383, %396 : vector<8x16xf32>
    %c94 = arith.constant 94 : index
    %398 = memref.load %arg4[%c94] : memref<108xf32, #tpu.memory_space<smem>>
    %399 = vector.broadcast %398 : f32 to vector<8x16xf32>
    %400 = arith.mulf %399, %389 : vector<8x16xf32>
    %401 = arith.addf %387, %400 : vector<8x16xf32>
    %c2_121 = arith.constant 2 : index
    %c1_122 = arith.constant 1 : index
    %c2_123 = arith.constant 2 : index
    %402 = vector.load %arg8[%c2_121, %c1_122, %c2_123] : memref<4x10x18xf32, #tpu.memory_space<vmem>>, vector<1x8x16xf32>
    %403 = vector.shape_cast %402 : vector<1x8x16xf32> to vector<8x16xf32>
    %c23 = arith.constant 23 : index
    %404 = memref.load %arg4[%c23] : memref<108xf32, #tpu.memory_space<smem>>
    %405 = vector.broadcast %404 : f32 to vector<8x16xf32>
    %406 = arith.mulf %405, %403 : vector<8x16xf32>
    %407 = arith.addf %393, %406 : vector<8x16xf32>
    %c59 = arith.constant 59 : index
    %408 = memref.load %arg4[%c59] : memref<108xf32, #tpu.memory_space<smem>>
    %409 = vector.broadcast %408 : f32 to vector<8x16xf32>
    %410 = arith.mulf %409, %403 : vector<8x16xf32>
    %411 = arith.addf %397, %410 : vector<8x16xf32>
    %c95 = arith.constant 95 : index
    %412 = memref.load %arg4[%c95] : memref<108xf32, #tpu.memory_space<smem>>
    %413 = vector.broadcast %412 : f32 to vector<8x16xf32>
    %414 = arith.mulf %413, %403 : vector<8x16xf32>
    %415 = arith.addf %401, %414 : vector<8x16xf32>
    %c2_124 = arith.constant 2 : index
    %c2_125 = arith.constant 2 : index
    %c0_126 = arith.constant 0 : index
    %416 = vector.load %arg8[%c2_124, %c2_125, %c0_126] : memref<4x10x18xf32, #tpu.memory_space<vmem>>, vector<1x8x16xf32>
    %417 = vector.shape_cast %416 : vector<1x8x16xf32> to vector<8x16xf32>
    %c24 = arith.constant 24 : index
    %418 = memref.load %arg4[%c24] : memref<108xf32, #tpu.memory_space<smem>>
    %419 = vector.broadcast %418 : f32 to vector<8x16xf32>
    %420 = arith.mulf %419, %417 : vector<8x16xf32>
    %421 = arith.addf %407, %420 : vector<8x16xf32>
    %c60 = arith.constant 60 : index
    %422 = memref.load %arg4[%c60] : memref<108xf32, #tpu.memory_space<smem>>
    %423 = vector.broadcast %422 : f32 to vector<8x16xf32>
    %424 = arith.mulf %423, %417 : vector<8x16xf32>
    %425 = arith.addf %411, %424 : vector<8x16xf32>
    %c96 = arith.constant 96 : index
    %426 = memref.load %arg4[%c96] : memref<108xf32, #tpu.memory_space<smem>>
    %427 = vector.broadcast %426 : f32 to vector<8x16xf32>
    %428 = arith.mulf %427, %417 : vector<8x16xf32>
    %429 = arith.addf %415, %428 : vector<8x16xf32>
    %c2_127 = arith.constant 2 : index
    %c2_128 = arith.constant 2 : index
    %c1_129 = arith.constant 1 : index
    %430 = vector.load %arg8[%c2_127, %c2_128, %c1_129] : memref<4x10x18xf32, #tpu.memory_space<vmem>>, vector<1x8x16xf32>
    %431 = vector.shape_cast %430 : vector<1x8x16xf32> to vector<8x16xf32>
    %c25 = arith.constant 25 : index
    %432 = memref.load %arg4[%c25] : memref<108xf32, #tpu.memory_space<smem>>
    %433 = vector.broadcast %432 : f32 to vector<8x16xf32>
    %434 = arith.mulf %433, %431 : vector<8x16xf32>
    %435 = arith.addf %421, %434 : vector<8x16xf32>
    %c61 = arith.constant 61 : index
    %436 = memref.load %arg4[%c61] : memref<108xf32, #tpu.memory_space<smem>>
    %437 = vector.broadcast %436 : f32 to vector<8x16xf32>
    %438 = arith.mulf %437, %431 : vector<8x16xf32>
    %439 = arith.addf %425, %438 : vector<8x16xf32>
    %c97 = arith.constant 97 : index
    %440 = memref.load %arg4[%c97] : memref<108xf32, #tpu.memory_space<smem>>
    %441 = vector.broadcast %440 : f32 to vector<8x16xf32>
    %442 = arith.mulf %441, %431 : vector<8x16xf32>
    %443 = arith.addf %429, %442 : vector<8x16xf32>
    %c2_130 = arith.constant 2 : index
    %c2_131 = arith.constant 2 : index
    %c2_132 = arith.constant 2 : index
    %444 = vector.load %arg8[%c2_130, %c2_131, %c2_132] : memref<4x10x18xf32, #tpu.memory_space<vmem>>, vector<1x8x16xf32>
    %445 = vector.shape_cast %444 : vector<1x8x16xf32> to vector<8x16xf32>
    %c26 = arith.constant 26 : index
    %446 = memref.load %arg4[%c26] : memref<108xf32, #tpu.memory_space<smem>>
    %447 = vector.broadcast %446 : f32 to vector<8x16xf32>
    %448 = arith.mulf %447, %445 : vector<8x16xf32>
    %449 = arith.addf %435, %448 : vector<8x16xf32>
    %c62 = arith.constant 62 : index
    %450 = memref.load %arg4[%c62] : memref<108xf32, #tpu.memory_space<smem>>
    %451 = vector.broadcast %450 : f32 to vector<8x16xf32>
    %452 = arith.mulf %451, %445 : vector<8x16xf32>
    %453 = arith.addf %439, %452 : vector<8x16xf32>
    %c98 = arith.constant 98 : index
    %454 = memref.load %arg4[%c98] : memref<108xf32, #tpu.memory_space<smem>>
    %455 = vector.broadcast %454 : f32 to vector<8x16xf32>
    %456 = arith.mulf %455, %445 : vector<8x16xf32>
    %457 = arith.addf %443, %456 : vector<8x16xf32>
    %c3_133 = arith.constant 3 : index
    %c0_134 = arith.constant 0 : index
    %c0_135 = arith.constant 0 : index
    %458 = vector.load %arg8[%c3_133, %c0_134, %c0_135] : memref<4x10x18xf32, #tpu.memory_space<vmem>>, vector<1x8x16xf32>
    %459 = vector.shape_cast %458 : vector<1x8x16xf32> to vector<8x16xf32>
    %c27 = arith.constant 27 : index
    %460 = memref.load %arg4[%c27] : memref<108xf32, #tpu.memory_space<smem>>
    %461 = vector.broadcast %460 : f32 to vector<8x16xf32>
    %462 = arith.mulf %461, %459 : vector<8x16xf32>
    %463 = arith.addf %449, %462 : vector<8x16xf32>
    %c63 = arith.constant 63 : index
    %464 = memref.load %arg4[%c63] : memref<108xf32, #tpu.memory_space<smem>>
    %465 = vector.broadcast %464 : f32 to vector<8x16xf32>
    %466 = arith.mulf %465, %459 : vector<8x16xf32>
    %467 = arith.addf %453, %466 : vector<8x16xf32>
    %c99 = arith.constant 99 : index
    %468 = memref.load %arg4[%c99] : memref<108xf32, #tpu.memory_space<smem>>
    %469 = vector.broadcast %468 : f32 to vector<8x16xf32>
    %470 = arith.mulf %469, %459 : vector<8x16xf32>
    %471 = arith.addf %457, %470 : vector<8x16xf32>
    %c3_136 = arith.constant 3 : index
    %c0_137 = arith.constant 0 : index
    %c1_138 = arith.constant 1 : index
    %472 = vector.load %arg8[%c3_136, %c0_137, %c1_138] : memref<4x10x18xf32, #tpu.memory_space<vmem>>, vector<1x8x16xf32>
    %473 = vector.shape_cast %472 : vector<1x8x16xf32> to vector<8x16xf32>
    %c28 = arith.constant 28 : index
    %474 = memref.load %arg4[%c28] : memref<108xf32, #tpu.memory_space<smem>>
    %475 = vector.broadcast %474 : f32 to vector<8x16xf32>
    %476 = arith.mulf %475, %473 : vector<8x16xf32>
    %477 = arith.addf %463, %476 : vector<8x16xf32>
    %c64 = arith.constant 64 : index
    %478 = memref.load %arg4[%c64] : memref<108xf32, #tpu.memory_space<smem>>
    %479 = vector.broadcast %478 : f32 to vector<8x16xf32>
    %480 = arith.mulf %479, %473 : vector<8x16xf32>
    %481 = arith.addf %467, %480 : vector<8x16xf32>
    %c100 = arith.constant 100 : index
    %482 = memref.load %arg4[%c100] : memref<108xf32, #tpu.memory_space<smem>>
    %483 = vector.broadcast %482 : f32 to vector<8x16xf32>
    %484 = arith.mulf %483, %473 : vector<8x16xf32>
    %485 = arith.addf %471, %484 : vector<8x16xf32>
    %c3_139 = arith.constant 3 : index
    %c0_140 = arith.constant 0 : index
    %c2_141 = arith.constant 2 : index
    %486 = vector.load %arg8[%c3_139, %c0_140, %c2_141] : memref<4x10x18xf32, #tpu.memory_space<vmem>>, vector<1x8x16xf32>
    %487 = vector.shape_cast %486 : vector<1x8x16xf32> to vector<8x16xf32>
    %c29 = arith.constant 29 : index
    %488 = memref.load %arg4[%c29] : memref<108xf32, #tpu.memory_space<smem>>
    %489 = vector.broadcast %488 : f32 to vector<8x16xf32>
    %490 = arith.mulf %489, %487 : vector<8x16xf32>
    %491 = arith.addf %477, %490 : vector<8x16xf32>
    %c65 = arith.constant 65 : index
    %492 = memref.load %arg4[%c65] : memref<108xf32, #tpu.memory_space<smem>>
    %493 = vector.broadcast %492 : f32 to vector<8x16xf32>
    %494 = arith.mulf %493, %487 : vector<8x16xf32>
    %495 = arith.addf %481, %494 : vector<8x16xf32>
    %c101 = arith.constant 101 : index
    %496 = memref.load %arg4[%c101] : memref<108xf32, #tpu.memory_space<smem>>
    %497 = vector.broadcast %496 : f32 to vector<8x16xf32>
    %498 = arith.mulf %497, %487 : vector<8x16xf32>
    %499 = arith.addf %485, %498 : vector<8x16xf32>
    %c3_142 = arith.constant 3 : index
    %c1_143 = arith.constant 1 : index
    %c0_144 = arith.constant 0 : index
    %500 = vector.load %arg8[%c3_142, %c1_143, %c0_144] : memref<4x10x18xf32, #tpu.memory_space<vmem>>, vector<1x8x16xf32>
    %501 = vector.shape_cast %500 : vector<1x8x16xf32> to vector<8x16xf32>
    %c30 = arith.constant 30 : index
    %502 = memref.load %arg4[%c30] : memref<108xf32, #tpu.memory_space<smem>>
    %503 = vector.broadcast %502 : f32 to vector<8x16xf32>
    %504 = arith.mulf %503, %501 : vector<8x16xf32>
    %505 = arith.addf %491, %504 : vector<8x16xf32>
    %c66 = arith.constant 66 : index
    %506 = memref.load %arg4[%c66] : memref<108xf32, #tpu.memory_space<smem>>
    %507 = vector.broadcast %506 : f32 to vector<8x16xf32>
    %508 = arith.mulf %507, %501 : vector<8x16xf32>
    %509 = arith.addf %495, %508 : vector<8x16xf32>
    %c102 = arith.constant 102 : index
    %510 = memref.load %arg4[%c102] : memref<108xf32, #tpu.memory_space<smem>>
    %511 = vector.broadcast %510 : f32 to vector<8x16xf32>
    %512 = arith.mulf %511, %501 : vector<8x16xf32>
    %513 = arith.addf %499, %512 : vector<8x16xf32>
    %c3_145 = arith.constant 3 : index
    %c1_146 = arith.constant 1 : index
    %c1_147 = arith.constant 1 : index
    %514 = vector.load %arg8[%c3_145, %c1_146, %c1_147] : memref<4x10x18xf32, #tpu.memory_space<vmem>>, vector<1x8x16xf32>
    %515 = vector.shape_cast %514 : vector<1x8x16xf32> to vector<8x16xf32>
    %c31 = arith.constant 31 : index
    %516 = memref.load %arg4[%c31] : memref<108xf32, #tpu.memory_space<smem>>
    %517 = vector.broadcast %516 : f32 to vector<8x16xf32>
    %518 = arith.mulf %517, %515 : vector<8x16xf32>
    %519 = arith.addf %505, %518 : vector<8x16xf32>
    %c67 = arith.constant 67 : index
    %520 = memref.load %arg4[%c67] : memref<108xf32, #tpu.memory_space<smem>>
    %521 = vector.broadcast %520 : f32 to vector<8x16xf32>
    %522 = arith.mulf %521, %515 : vector<8x16xf32>
    %523 = arith.addf %509, %522 : vector<8x16xf32>
    %c103 = arith.constant 103 : index
    %524 = memref.load %arg4[%c103] : memref<108xf32, #tpu.memory_space<smem>>
    %525 = vector.broadcast %524 : f32 to vector<8x16xf32>
    %526 = arith.mulf %525, %515 : vector<8x16xf32>
    %527 = arith.addf %513, %526 : vector<8x16xf32>
    %c3_148 = arith.constant 3 : index
    %c1_149 = arith.constant 1 : index
    %c2_150 = arith.constant 2 : index
    %528 = vector.load %arg8[%c3_148, %c1_149, %c2_150] : memref<4x10x18xf32, #tpu.memory_space<vmem>>, vector<1x8x16xf32>
    %529 = vector.shape_cast %528 : vector<1x8x16xf32> to vector<8x16xf32>
    %c32 = arith.constant 32 : index
    %530 = memref.load %arg4[%c32] : memref<108xf32, #tpu.memory_space<smem>>
    %531 = vector.broadcast %530 : f32 to vector<8x16xf32>
    %532 = arith.mulf %531, %529 : vector<8x16xf32>
    %533 = arith.addf %519, %532 : vector<8x16xf32>
    %c68 = arith.constant 68 : index
    %534 = memref.load %arg4[%c68] : memref<108xf32, #tpu.memory_space<smem>>
    %535 = vector.broadcast %534 : f32 to vector<8x16xf32>
    %536 = arith.mulf %535, %529 : vector<8x16xf32>
    %537 = arith.addf %523, %536 : vector<8x16xf32>
    %c104 = arith.constant 104 : index
    %538 = memref.load %arg4[%c104] : memref<108xf32, #tpu.memory_space<smem>>
    %539 = vector.broadcast %538 : f32 to vector<8x16xf32>
    %540 = arith.mulf %539, %529 : vector<8x16xf32>
    %541 = arith.addf %527, %540 : vector<8x16xf32>
    %c3_151 = arith.constant 3 : index
    %c2_152 = arith.constant 2 : index
    %c0_153 = arith.constant 0 : index
    %542 = vector.load %arg8[%c3_151, %c2_152, %c0_153] : memref<4x10x18xf32, #tpu.memory_space<vmem>>, vector<1x8x16xf32>
    %543 = vector.shape_cast %542 : vector<1x8x16xf32> to vector<8x16xf32>
    %c33 = arith.constant 33 : index
    %544 = memref.load %arg4[%c33] : memref<108xf32, #tpu.memory_space<smem>>
    %545 = vector.broadcast %544 : f32 to vector<8x16xf32>
    %546 = arith.mulf %545, %543 : vector<8x16xf32>
    %547 = arith.addf %533, %546 : vector<8x16xf32>
    %c69 = arith.constant 69 : index
    %548 = memref.load %arg4[%c69] : memref<108xf32, #tpu.memory_space<smem>>
    %549 = vector.broadcast %548 : f32 to vector<8x16xf32>
    %550 = arith.mulf %549, %543 : vector<8x16xf32>
    %551 = arith.addf %537, %550 : vector<8x16xf32>
    %c105 = arith.constant 105 : index
    %552 = memref.load %arg4[%c105] : memref<108xf32, #tpu.memory_space<smem>>
    %553 = vector.broadcast %552 : f32 to vector<8x16xf32>
    %554 = arith.mulf %553, %543 : vector<8x16xf32>
    %555 = arith.addf %541, %554 : vector<8x16xf32>
    %c3_154 = arith.constant 3 : index
    %c2_155 = arith.constant 2 : index
    %c1_156 = arith.constant 1 : index
    %556 = vector.load %arg8[%c3_154, %c2_155, %c1_156] : memref<4x10x18xf32, #tpu.memory_space<vmem>>, vector<1x8x16xf32>
    %557 = vector.shape_cast %556 : vector<1x8x16xf32> to vector<8x16xf32>
    %c34 = arith.constant 34 : index
    %558 = memref.load %arg4[%c34] : memref<108xf32, #tpu.memory_space<smem>>
    %559 = vector.broadcast %558 : f32 to vector<8x16xf32>
    %560 = arith.mulf %559, %557 : vector<8x16xf32>
    %561 = arith.addf %547, %560 : vector<8x16xf32>
    %c70 = arith.constant 70 : index
    %562 = memref.load %arg4[%c70] : memref<108xf32, #tpu.memory_space<smem>>
    %563 = vector.broadcast %562 : f32 to vector<8x16xf32>
    %564 = arith.mulf %563, %557 : vector<8x16xf32>
    %565 = arith.addf %551, %564 : vector<8x16xf32>
    %c106 = arith.constant 106 : index
    %566 = memref.load %arg4[%c106] : memref<108xf32, #tpu.memory_space<smem>>
    %567 = vector.broadcast %566 : f32 to vector<8x16xf32>
    %568 = arith.mulf %567, %557 : vector<8x16xf32>
    %569 = arith.addf %555, %568 : vector<8x16xf32>
    %c3_157 = arith.constant 3 : index
    %c2_158 = arith.constant 2 : index
    %c2_159 = arith.constant 2 : index
    %570 = vector.load %arg8[%c3_157, %c2_158, %c2_159] : memref<4x10x18xf32, #tpu.memory_space<vmem>>, vector<1x8x16xf32>
    %571 = vector.shape_cast %570 : vector<1x8x16xf32> to vector<8x16xf32>
    %c35 = arith.constant 35 : index
    %572 = memref.load %arg4[%c35] : memref<108xf32, #tpu.memory_space<smem>>
    %573 = vector.broadcast %572 : f32 to vector<8x16xf32>
    %574 = arith.mulf %573, %571 : vector<8x16xf32>
    %575 = arith.addf %561, %574 : vector<8x16xf32>
    %c71 = arith.constant 71 : index
    %576 = memref.load %arg4[%c71] : memref<108xf32, #tpu.memory_space<smem>>
    %577 = vector.broadcast %576 : f32 to vector<8x16xf32>
    %578 = arith.mulf %577, %571 : vector<8x16xf32>
    %579 = arith.addf %565, %578 : vector<8x16xf32>
    %c107 = arith.constant 107 : index
    %580 = memref.load %arg4[%c107] : memref<108xf32, #tpu.memory_space<smem>>
    %581 = vector.broadcast %580 : f32 to vector<8x16xf32>
    %582 = arith.mulf %581, %571 : vector<8x16xf32>
    %583 = arith.addf %569, %582 : vector<8x16xf32>
    %c0_160 = arith.constant 0 : index
    %c0_161 = arith.constant 0 : index
    %c0_162 = arith.constant 0 : index
    %c0_163 = arith.constant 0 : index
    %584 = vector.load %arg7[%c0_160, %c0_161, %c0_162, %c0_163] : memref<1x3x8x16xf32, #tpu.memory_space<vmem>>, vector<1x1x8x16xf32>
    %585 = vector.shape_cast %584 : vector<1x1x8x16xf32> to vector<8x16xf32>
    %586 = vector.shape_cast %575 : vector<8x16xf32> to vector<1x1x8x16xf32>
    tpu.vector_store %arg7[%c0_160, %c0_161, %c0_162, %c0_163], %586 {strides = array<i32>} : memref<1x3x8x16xf32, #tpu.memory_space<vmem>>, vector<1x1x8x16xf32>,
    %c0_164 = arith.constant 0 : index
    %c1_165 = arith.constant 1 : index
    %c0_166 = arith.constant 0 : index
    %c0_167 = arith.constant 0 : index
    %587 = vector.load %arg7[%c0_164, %c1_165, %c0_166, %c0_167] : memref<1x3x8x16xf32, #tpu.memory_space<vmem>>, vector<1x1x8x16xf32>
    %588 = vector.shape_cast %587 : vector<1x1x8x16xf32> to vector<8x16xf32>
    %589 = vector.shape_cast %579 : vector<8x16xf32> to vector<1x1x8x16xf32>
    tpu.vector_store %arg7[%c0_164, %c1_165, %c0_166, %c0_167], %589 {strides = array<i32>} : memref<1x3x8x16xf32, #tpu.memory_space<vmem>>, vector<1x1x8x16xf32>,
    %c0_168 = arith.constant 0 : index
    %c2_169 = arith.constant 2 : index
    %c0_170 = arith.constant 0 : index
    %c0_171 = arith.constant 0 : index
    %590 = vector.load %arg7[%c0_168, %c2_169, %c0_170, %c0_171] : memref<1x3x8x16xf32, #tpu.memory_space<vmem>>, vector<1x1x8x16xf32>
    %591 = vector.shape_cast %590 : vector<1x1x8x16xf32> to vector<8x16xf32>
    %592 = vector.shape_cast %583 : vector<8x16xf32> to vector<1x1x8x16xf32>
    tpu.vector_store %arg7[%c0_168, %c2_169, %c0_170, %c0_171], %592 {strides = array<i32>} : memref<1x3x8x16xf32, #tpu.memory_space<vmem>>, vector<1x1x8x16xf32>,
    return
  }
  func.func @transform_0(%arg0: i32, %arg1: i32, %arg2: memref<4xf32, #tpu.memory_space<smem>>, %arg3: memref<4xf32, #tpu.memory_space<smem>>, %arg4: memref<108xf32, #tpu.memory_space<smem>>, %arg5: memref<3xf32, #tpu.memory_space<smem>>) -> (i32, i32, i32, i32) {
    %c0_i32 = arith.constant 0 : i32
    %c0_i32_0 = arith.constant 0 : i32
    %c0_i32_1 = arith.constant 0 : i32
    %c0_i32_2 = arith.constant 0 : i32
    return %arg0, %c0_i32, %c0_i32_0, %c0_i32_1 : i32, i32, i32, i32
  }
  func.func @transform_1(%arg0: i32, %arg1: i32, %arg2: memref<4xf32, #tpu.memory_space<smem>>, %arg3: memref<4xf32, #tpu.memory_space<smem>>, %arg4: memref<108xf32, #tpu.memory_space<smem>>, %arg5: memref<3xf32, #tpu.memory_space<smem>>) -> (i32, i32, i32, i32) {
    %c0_i32 = arith.constant 0 : i32
    %c0_i32_0 = arith.constant 0 : i32
    %c0_i32_1 = arith.constant 0 : i32
    return %arg0, %c0_i32, %arg1, %c0_i32_0 : i32, i32, i32, i32
  }
}

</mosaic_0001>

<llo_original>
// kernel: tpu_custom_call.1
$region0: #{tpu_custom_call.1}
  #allocation0 [shape = 'u32[]', space=smem, size = 0x4, offset = 0x4, fixed_abs, tag = 'smem constant byte address 0x4 - core index']
  #allocation1 [shape = 'u32[144,128]{1,0:T(1,128)}', space=vmem, size = 0x12000, scoped, tag = 'internal scratch']
  #allocation2 [shape = 'f32[4,10,18]{2,1,0:T(8,128)}', space=vmem, size = 0x8000, scoped, tag = 'scratch operand']
  #allocation3 [shape = 's32[1]{0}', space=sflag, size = 0x4, scoped, tag = 'scoped memory for tpu_custom_call.1']
  #allocation4 [shape = 'u8[512]{0}', space=smem, size = 0x200, scoped, tag = 'prefetched SMEM operand 0']
  #allocation5 [shape = 'u8[512]{0}', space=smem, size = 0x200, scoped, tag = 'prefetched SMEM operand 1']
  #allocation6 [shape = 'u8[512]{0}', space=smem, size = 0x200, scoped, tag = 'prefetched SMEM operand 2']
  #allocation7 [shape = 'u8[512]{0}', space=smem, size = 0x200, scoped, tag = 'prefetched SMEM operand 3']
  %s0 = inlined_call_operand.hbm [shape: f32[4], index: 0, kind: input, shape index: {}]
  %s1 = inlined_call_operand.vmem [shape: f32[4], index: 1, kind: input, shape index: {}]
  %s2 = inlined_call_operand.vmem [shape: f32[108], index: 2, kind: input, shape index: {}]
  %s3 = inlined_call_operand.vmem [shape: f32[3], index: 3, kind: input, shape index: {}]
  %s4 = inlined_call_operand.hbm [shape: f32[2,4,16,16], index: 4, kind: input, shape index: {}]
  %s5 = inlined_call_operand.hbm [shape: f32[2,3,16,16], index: 5, kind: output, shape index: {}]
  %s6 = sld [smem:[#allocation0]]
  $region57: #{tpu_custom_call.1} parent=0
    _
  %s8 = ssub.s32 1, %s6
  %s9 = scalar_select 0, %s8, %s6
  %11 = dma.hbm_to_smem %s0, 16, [#allocation4], [#allocation3]
  %s12 = sshll.u32 %s1, 4
  %s13 = int_to_ptr.vmem [resolvable:$true] %s12
  %15 = dma.vmem_to_smem %s13, 16, [#allocation5], [#allocation3]
  %s16 = sshll.u32 %s2, 4
  %s17 = int_to_ptr.vmem [resolvable:$true] %s16
  %19 = dma.vmem_to_smem %s17, 16, [#allocation6], [#allocation3]
  %s20 = sshll.u32 %s3, 4
  %s21 = int_to_ptr.vmem [resolvable:$true] %s20
  %23 = dma.vmem_to_smem %s21, 16, [#allocation7], [#allocation3]
  %24 = dma.done [#allocation3], 64
  %25 = sfence
  $region1: #{tpu_custom_call.1} parent=0
    #allocation8 [shape = 'u8[65536]{0}', space=vmem, size = 0x10000, scoped, tag = 'input window, operand 4']
    #allocation9 [shape = 's32[2]{0}', space=sflag, size = 0x8, scoped, tag = 'scoped memory for tpu_custom_call.1']
    #allocation10 [shape = 's32[2]{0}', space=sflag, size = 0x8, scoped, tag = 'scoped memory for tpu_custom_call.1']
    #allocation11 [shape = 'u8[24576]{0}', space=vmem, size = 0x6000, scoped, tag = 'output window, operand 0']
    %26 = vsyncpa [#allocation9], 0
    %s27 = scalar_lea.sflag [#allocation9], 1
    %28 = vsyncpa %s27, 0
    %29 = vsyncpa [#allocation10], 0
    %s30 = scalar_lea.sflag [#allocation10], 1
    %31 = vsyncpa %s30, 0
    loop: start=0, step=1, limit=6
    $region2: #{tpu_custom_call.1} parent=1 // loop_pre_header
      _
    $region3: #{tpu_custom_call.1} parent=1 // loop_header
      %s33 = sphi 0, %s37
      %p34 = scmp.ge.s32.totalorder %s33, 6
      %s40 = sphi 0, %s52
      %s41 = sphi 0, %s48
      %s42 = sphi 0, %s40
      %s43 = sphi 0, %s41
      %s44 = sphi 0, %s42
      %s45 = sphi 0, %s43
      %s55 = sphi 0, %s57
      %s58 = sphi 0, %s55
      %s59 = sphi 0, %s58
      %s75 = sphi 0, %s59
      %s83 = sphi 0, %s85
      %s86 = sphi 0, %s83
      %s87 = sphi 0, %s86
      %s103 = sphi 0, %s87
    $region4: #{tpu_custom_call.1} parent=1 // loop_header_branch
      %36 = sbr.rel (%p34) target = $region8
    $region5: #{tpu_custom_call.1} parent=1 // loop_body
      %s38 = ssub.s32 %s33, 1
      %s39 = ssub.s32 %s33, 2
      %s46 = sadd.s32 1, %s41
      %p47 = scmp.ge.s32.totalorder %s46, 2
      %s48 = scalar_select %p47, 0, %s46
      %s49 = sadd.s32 1, %s40
      %s50 = scalar_select %p47, %s49, %s40
      %p51 = scmp.ge.s32.totalorder %s50, 2
      %s52 = scalar_select %p51, 0, %s50
      %s53 = ssub.s32 %s40, %s52
      %p54 = scmp.eq.s32.totalorder %s53, 0
      %s56 = sadd.s32 %s55, 1
      %s57 = scalar_select %p54, %s55, %s56
      %p60 = pneg %p54
      %p61 = scmp.eq.s32.totalorder %s33, 3
      %p62 = por %p60, %p61
      %p63 = scmp.ne.s32.totalorder %s55, %s58
      %p64 = scmp.eq.s32.totalorder %s33, 0
      %p65 = por %p63, %p64
      %p66 = scmp.ne.s32.totalorder %s55, %s58
      %p67 = scmp.eq.s32.totalorder %s38, 3
      %p68 = por %p66, %p67
      %p69 = scmp.ne.s32.totalorder %s58, %s59
      %p70 = scmp.eq.s32.totalorder %s38, 0
      %p71 = por %p69, %p70
      %p72 = scmp.ne.s32.totalorder %s58, %s59
      %p73 = scmp.eq.s32.totalorder %s39, 3
      %p74 = por %p72, %p73
      %p76 = scmp.ne.s32.totalorder %s59, %s75
      %p77 = scmp.eq.s32.totalorder %s39, 0
      %p78 = por %p76, %p77
      %s79 = ssub.s32 %s40, %s52
      %s80 = ssub.s32 %s41, %s48
      %s81 = sor.u32 %s79, %s80
      %p82 = scmp.eq.s32.totalorder %s81, 0
      %s84 = sadd.s32 %s83, 1
      %s85 = scalar_select %p82, %s83, %s84
      %p88 = pneg %p82
      %p89 = scmp.eq.s32.totalorder %s33, 3
      %p90 = por %p88, %p89
      %p91 = scmp.ne.s32.totalorder %s83, %s86
      %p92 = scmp.eq.s32.totalorder %s33, 0
      %p93 = por %p91, %p92
      %p94 = scmp.ne.s32.totalorder %s83, %s86
      %p95 = scmp.eq.s32.totalorder %s38, 3
      %p96 = por %p94, %p95
      %p97 = scmp.ne.s32.totalorder %s86, %s87
      %p98 = scmp.eq.s32.totalorder %s38, 0
      %p99 = por %p97, %p98
      %p100 = scmp.ne.s32.totalorder %s86, %s87
      %p101 = scmp.eq.s32.totalorder %s39, 3
      %p102 = por %p100, %p101
      %p104 = scmp.ne.s32.totalorder %s87, %s103
      %p105 = scmp.eq.s32.totalorder %s39, 0
      %p106 = por %p104, %p105
      %p107 = scmp.le.s32.totalorder 1, %s33
      %p108 = scmp.lt.s32.totalorder %s33, 5
      %p109 = pnand %p107, %p108
      %p110 = pneg %p109
      // Predicated region
      $region9: #{tpu_custom_call.1} parent=5 // pred_check
        _
      $region10: #{tpu_custom_call.1} parent=5 // pred_check_branch
        %112 = sbr.rel (%p109) target = $region12
      $region11: #{tpu_custom_call.1} parent=5 // pred_region
        %s113 = ssub.s32 %s33, 1
      $region12: #{tpu_custom_call.1} parent=5 // pred_fallthru
        _
      %p114 = scmp.lt.s32.totalorder %s33, 4
      // Predicated region
      $region13: #{tpu_custom_call.1} parent=5 // pred_check
        %p115 = pneg %p114
      $region14: #{tpu_custom_call.1} parent=5 // pred_check_branch
        %117 = sbr.rel (%p115) target = $region16
      $region15: #{tpu_custom_call.1} parent=5 // pred_region
        // Predicated region
        $region17: #{tpu_custom_call.1} parent=15 // pred_check
          %p118 = pneg %p65
        $region18: #{tpu_custom_call.1} parent=15 // pred_check_branch
          %120 = sbr.rel (%p118) target = $region20
        $region19: #{tpu_custom_call.1} parent=15 // pred_region
          %s121 = sand.u32 %s55, 1
          %s122 = scalar_lea.sflag [#allocation9], %s121
          %s123 = sand.u32 %s55, 1
          %s124 = smul.addr %s123, 64
          %s125 = scalar_lea.vmem [#allocation8], %s124
          %s127 = ssub.s32 1024, 1024
          %128 = vsyncadd %s122, %s127
          %s129 = smul.addr %s40, 8
          %s130 = smul.addr %s129, 128
          %s131 = scalar_lea.hbm %s4, %s130
          %s132 = sshll.u32 %s125, 4
          %s133 = int_to_ptr.vmem [resolvable:$true] %s132
          %138 = dma.hbm_to_vmem [thread:$0]  %s131, 1024, %s133, %s122, 128, 128, 8
        $region20: #{tpu_custom_call.1} parent=15 // pred_fallthru
          _
      $region16: #{tpu_custom_call.1} parent=5 // pred_fallthru
        _
      %p139 = scmp.le.s32.totalorder 1, %s33
      %p140 = scmp.lt.s32.totalorder %s33, 5
      %p141 = pnand %p139, %p140
      %p142 = pneg %p141
      // Predicated region
      $region21: #{tpu_custom_call.1} parent=5 // pred_check
        _
      $region22: #{tpu_custom_call.1} parent=5 // pred_check_branch
        %144 = sbr.rel (%p141) target = $region24
      $region23: #{tpu_custom_call.1} parent=5 // pred_region
        %s145 = ssub.s32 %s33, 1
        %s146 = sand.u32 %s58, 1
        %s147 = scalar_lea.sflag [#allocation9], %s146
        %s148 = sand.u32 %s58, 1
        %s149 = smul.addr %s148, 64
        %s150 = scalar_lea.vmem [#allocation8], %s149
        // Predicated region
        $region25: #{tpu_custom_call.1} parent=23 // pred_check
          %p151 = pneg %p71
        $region26: #{tpu_custom_call.1} parent=23 // pred_check_branch
          %153 = sbr.rel (%p151) target = $region28
        $region27: #{tpu_custom_call.1} parent=23 // pred_region
          %154 = dma.done %s147, 1024
        $region28: #{tpu_custom_call.1} parent=23 // pred_fallthru
          _
        %s155 = sand.u32 %s58, 1
        %s156 = scalar_lea.sflag [#allocation9], %s155
        %s157 = sand.u32 %s58, 1
        %s158 = smul.addr %s157, 64
        %s159 = scalar_lea.vmem [#allocation8], %s158
        %p160 = pneg %p71
        %p161 = pneg %p68
        %p162 = pneg %p99
        %p163 = pneg %p96
        %s164 = sand.u32 %s86, 1
        %s165 = scalar_lea.sflag [#allocation10], %s164
        %s166 = sand.u32 %s86, 1
        %s167 = smul.addr %s166, 24
        %s168 = scalar_lea.vmem [#allocation11], %s167
        %vm169 = vcmask 7168
        %170 = vst.msk [vmem:[#allocation2] sm:$0xff] %vm169, 0.0
        %vm171 = vcmask 1024
        %172 = vst.msk [vmem:[#allocation2 + $0x8] sm:$0x3] %vm171, 0.0
        %173 = vst.msk [vmem:[#allocation2 + $0x10] sm:$0xff] %vm169, 0.0
        %174 = vst.msk [vmem:[#allocation2 + $0x18] sm:$0x3] %vm171, 0.0
        %175 = vst.msk [vmem:[#allocation2 + $0x20] sm:$0xff] %vm169, 0.0
        %176 = vst.msk [vmem:[#allocation2 + $0x28] sm:$0x3] %vm171, 0.0
        %177 = vst.msk [vmem:[#allocation2 + $0x30] sm:$0xff] %vm169, 0.0
        %178 = vst.msk [vmem:[#allocation2 + $0x38] sm:$0x3] %vm171, 0.0
        %vm179 = vcmask 146568
        %180 = vst.msk [vmem:[#allocation2] sm:$0xff] %vm179, 0.0
        %vm181 = vcmask 140424
        %182 = vst.msk [vmem:[#allocation2 + $0x8] sm:$0x3] %vm181, 0.0
        %183 = vst.msk [vmem:[#allocation2 + $0x10] sm:$0xff] %vm179, 0.0
        %184 = vst.msk [vmem:[#allocation2 + $0x18] sm:$0x3] %vm181, 0.0
        %185 = vst.msk [vmem:[#allocation2 + $0x20] sm:$0xff] %vm179, 0.0
        %186 = vst.msk [vmem:[#allocation2 + $0x28] sm:$0x3] %vm181, 0.0
        %187 = vst.msk [vmem:[#allocation2 + $0x30] sm:$0xff] %vm179, 0.0
        %188 = vst.msk [vmem:[#allocation2 + $0x38] sm:$0x3] %vm181, 0.0
        %s189 = smul.u32 %s43, 8
        %s190 = scalar_lea.vmem %s150, %s189 [#allocation8]
        %v191 = vld [vmem:[%s190] sm:$0xff]
        %s192 = sld [smem:[#allocation4]]
        %v193 = vstv %s192
        %v194 = vmul.f32 %v191, %v193
        %s195 = sld [smem:[#allocation5]]
        %v196 = vstv %s195
        %v197 = vadd.f32 %v194, %v196
        %v198 = vmax.f32 %v197, 0.0
        %200 = vrot.lane.b32.xlu0 %v198, 1
        %v201 = vpop.permute.xlu0 %200
        %vm203 = vcmask 138248
        %204 = vst.msk [vmem:[#allocation2 + $0x1] sm:$0xff] %vm203, %v201
        %s205 = sadd.s32 %s189, 16
        %s206 = scalar_lea.vmem %s150, %s205 [#allocation8]
        %v207 = vld [vmem:[%s206] sm:$0xff]
        %s208 = sld [smem:[#allocation4 + $0x1]]
        %v209 = vstv %s208
        %v210 = vmul.f32 %v207, %v209
        %s211 = sld [smem:[#allocation5 + $0x1]]
        %v212 = vstv %s211
        %v213 = vadd.f32 %v210, %v212
        %v214 = vmax.f32 %v213, 0.0
        %216 = vrot.lane.b32.xlu0 %v214, 1
        %v217 = vpop.permute.xlu0 %216
        %s219 = scalar_lea.vmem [#allocation2], 16
        %220 = vst.msk [vmem:[%s219 + $0x1] sm:$0xff] %vm203, %v217
        %s221 = sadd.s32 %s189, 32
        %s222 = scalar_lea.vmem %s150, %s221 [#allocation8]
        %v223 = vld [vmem:[%s222] sm:$0xff]
        %s224 = sld [smem:[#allocation4 + $0x2]]
        %v225 = vstv %s224
        %v226 = vmul.f32 %v223, %v225
        %s227 = sld [smem:[#allocation5 + $0x2]]
        %v228 = vstv %s227
        %v229 = vadd.f32 %v226, %v228
        %v230 = vmax.f32 %v229, 0.0
        %232 = vrot.lane.b32.xlu0 %v230, 1
        %v233 = vpop.permute.xlu0 %232
        %s235 = scalar_lea.vmem [#allocation2], 32
        %236 = vst.msk [vmem:[%s235 + $0x1] sm:$0xff] %vm203, %v233
        %s237 = sadd.s32 %s189, 48
        %s238 = scalar_lea.vmem %s150, %s237 [#allocation8]
        %v239 = vld [vmem:[%s238] sm:$0xff]
        %s240 = sld [smem:[#allocation4 + $0x3]]
        %v241 = vstv %s240
        %v242 = vmul.f32 %v239, %v241
        %s243 = sld [smem:[#allocation5 + $0x3]]
        %v244 = vstv %s243
        %v245 = vadd.f32 %v242, %v244
        %v246 = vmax.f32 %v245, 0.0
        %248 = vrot.lane.b32.xlu0 %v246, 1
        %v249 = vpop.permute.xlu0 %248
        %s251 = scalar_lea.vmem [#allocation2], 48
        %252 = vst.msk [vmem:[%s251 + $0x1] sm:$0xff] %vm203, %v249
        %p253 = scmp.eq.s32.totalorder %s43, 0
        // Predicated region
        $region29: #{tpu_custom_call.1} parent=23 // pred_check
          %p254 = pneg %p253
        $region30: #{tpu_custom_call.1} parent=23 // pred_check_branch
          %256 = sbr.rel (%p254) target = $region32
        $region31: #{tpu_custom_call.1} parent=23 // pred_region
          %vm257 = vcmask 131080
          %258 = vst.msk [vmem:[#allocation2] sm:$0x1] %vm257, 0.0
          %259 = vst.msk [vmem:[#allocation2 + $0x10] sm:$0x1] %vm257, 0.0
          %260 = vst.msk [vmem:[#allocation2 + $0x20] sm:$0x1] %vm257, 0.0
          %261 = vst.msk [vmem:[#allocation2 + $0x30] sm:$0x1] %vm257, 0.0
        $region32: #{tpu_custom_call.1} parent=23 // pred_fallthru
          _
        %p262 = scmp.gt.s32.totalorder %s43, 0
        // Predicated region
        $region33: #{tpu_custom_call.1} parent=23 // pred_check
          %p263 = pneg %p262
        $region34: #{tpu_custom_call.1} parent=23 // pred_check_branch
          %265 = sbr.rel (%p263) target = $region36
        $region35: #{tpu_custom_call.1} parent=23 // pred_region
          %s266 = ssub.s32 %s189, 1
          %s267 = scalar_lea.vmem %s150, %s266 [#allocation8]
          %v268 = vld [vmem:[%s267] sm:$0x1]
          %s269 = sld [smem:[#allocation4]]
          %v270 = vstv %s269
          %v271 = vmul.f32 %v268, %v270
          %s272 = sld [smem:[#allocation5]]
          %v273 = vstv %s272
          %v274 = vadd.f32 %v271, %v273
          %v275 = vmax.f32 %v274, 0.0
          %277 = vrot.lane.b32.xlu0 %v275, 1
          %v278 = vpop.permute.xlu0 %277
          %vm280 = vcmask 131080
          %281 = vst.msk [vmem:[#allocation2] sm:$0x1] %vm280, %v278
          %s282 = sadd.s32 %s266, 16
          %s283 = scalar_lea.vmem %s150, %s282 [#allocation8]
          %v284 = vld [vmem:[%s283] sm:$0x1]
          %s285 = sld [smem:[#allocation4 + $0x1]]
          %v286 = vstv %s285
          %v287 = vmul.f32 %v284, %v286
          %s288 = sld [smem:[#allocation5 + $0x1]]
          %v289 = vstv %s288
          %v290 = vadd.f32 %v287, %v289
          %v291 = vmax.f32 %v290, 0.0
          %293 = vrot.lane.b32.xlu0 %v291, 1
          %v294 = vpop.permute.xlu0 %293
          %296 = vst.msk [vmem:[%s219] sm:$0x1] %vm280, %v294
          %s297 = sadd.s32 %s266, 32
          %s298 = scalar_lea.vmem %s150, %s297 [#allocation8]
          %v299 = vld [vmem:[%s298] sm:$0x1]
          %s300 = sld [smem:[#allocation4 + $0x2]]
          %v301 = vstv %s300
          %v302 = vmul.f32 %v299, %v301
          %s303 = sld [smem:[#allocation5 + $0x2]]
          %v304 = vstv %s303
          %v305 = vadd.f32 %v302, %v304
          %v306 = vmax.f32 %v305, 0.0
          %308 = vrot.lane.b32.xlu0 %v306, 1
          %v309 = vpop.permute.xlu0 %308
          %311 = vst.msk [vmem:[%s235] sm:$0x1] %vm280, %v309
          %s312 = sadd.s32 %s266, 48
          %s313 = scalar_lea.vmem %s150, %s312 [#allocation8]
          %v314 = vld [vmem:[%s313] sm:$0x1]
          %s315 = sld [smem:[#allocation4 + $0x3]]
          %v316 = vstv %s315
          %v317 = vmul.f32 %v314, %v316
          %s318 = sld [smem:[#allocation5 + $0x3]]
          %v319 = vstv %s318
          %v320 = vadd.f32 %v317, %v319
          %v321 = vmax.f32 %v320, 0.0
          %323 = vrot.lane.b32.xlu0 %v321, 1
          %v324 = vpop.permute.xlu0 %323
          %326 = vst.msk [vmem:[%s251] sm:$0x1] %vm280, %v324
        $region36: #{tpu_custom_call.1} parent=23 // pred_fallthru
          _
        %p327 = scmp.eq.s32.totalorder %s43, 1
        // Predicated region
        $region37: #{tpu_custom_call.1} parent=23 // pred_check
          %p328 = pneg %p327
        $region38: #{tpu_custom_call.1} parent=23 // pred_check_branch
          %330 = sbr.rel (%p328) target = $region40
        $region39: #{tpu_custom_call.1} parent=23 // pred_region
          %vm331 = vcmask 131080
          %332 = vst.msk [vmem:[#allocation2 + $0x9] sm:$0x1] %vm331, 0.0
          %333 = vst.msk [vmem:[#allocation2 + $0x19] sm:$0x1] %vm331, 0.0
          %334 = vst.msk [vmem:[#allocation2 + $0x29] sm:$0x1] %vm331, 0.0
          %335 = vst.msk [vmem:[#allocation2 + $0x39] sm:$0x1] %vm331, 0.0
        $region40: #{tpu_custom_call.1} parent=23 // pred_fallthru
          _
        %p336 = scmp.lt.s32.totalorder %s43, 1
        // Predicated region
        $region41: #{tpu_custom_call.1} parent=23 // pred_check
          %p337 = pneg %p336
        $region42: #{tpu_custom_call.1} parent=23 // pred_check_branch
          %339 = sbr.rel (%p337) target = $region44
        $region43: #{tpu_custom_call.1} parent=23 // pred_region
          %s340 = sadd.s32 %s189, 8
          %s341 = scalar_lea.vmem %s150, %s340 [#allocation8]
          %v342 = vld [vmem:[%s341] sm:$0x1]
          %s343 = sld [smem:[#allocation4]]
          %v344 = vstv %s343
          %v345 = vmul.f32 %v342, %v344
          %s346 = sld [smem:[#allocation5]]
          %v347 = vstv %s346
          %v348 = vadd.f32 %v345, %v347
          %v349 = vmax.f32 %v348, 0.0
          %351 = vrot.lane.b32.xlu0 %v349, 1
          %v352 = vpop.permute.xlu0 %351
          %vm354 = vcmask 131080
          %355 = vst.msk [vmem:[#allocation2 + $0x9] sm:$0x1] %vm354, %v352
          %s356 = sadd.s32 %s340, 16
          %s357 = scalar_lea.vmem %s150, %s356 [#allocation8]
          %v358 = vld [vmem:[%s357] sm:$0x1]
          %s359 = sld [smem:[#allocation4 + $0x1]]
          %v360 = vstv %s359
          %v361 = vmul.f32 %v358, %v360
          %s362 = sld [smem:[#allocation5 + $0x1]]
          %v363 = vstv %s362
          %v364 = vadd.f32 %v361, %v363
          %v365 = vmax.f32 %v364, 0.0
          %367 = vrot.lane.b32.xlu0 %v365, 1
          %v368 = vpop.permute.xlu0 %367
          %370 = vst.msk [vmem:[%s219 + $0x9] sm:$0x1] %vm354, %v368
          %s371 = sadd.s32 %s340, 32
          %s372 = scalar_lea.vmem %s150, %s371 [#allocation8]
          %v373 = vld [vmem:[%s372] sm:$0x1]
          %s374 = sld [smem:[#allocation4 + $0x2]]
          %v375 = vstv %s374
          %v376 = vmul.f32 %v373, %v375
          %s377 = sld [smem:[#allocation5 + $0x2]]
          %v378 = vstv %s377
          %v379 = vadd.f32 %v376, %v378
          %v380 = vmax.f32 %v379, 0.0
          %382 = vrot.lane.b32.xlu0 %v380, 1
          %v383 = vpop.permute.xlu0 %382
          %385 = vst.msk [vmem:[%s235 + $0x9] sm:$0x1] %vm354, %v383
          %s386 = sadd.s32 %s340, 48
          %s387 = scalar_lea.vmem %s150, %s386 [#allocation8]
          %v388 = vld [vmem:[%s387] sm:$0x1]
          %s389 = sld [smem:[#allocation4 + $0x3]]
          %v390 = vstv %s389
          %v391 = vmul.f32 %v388, %v390
          %s392 = sld [smem:[#allocation5 + $0x3]]
          %v393 = vstv %s392
          %v394 = vadd.f32 %v391, %v393
          %v395 = vmax.f32 %v394, 0.0
          %397 = vrot.lane.b32.xlu0 %v395, 1
          %v398 = vpop.permute.xlu0 %397
          %400 = vst.msk [vmem:[%s251 + $0x9] sm:$0x1] %vm354, %v398
        $region44: #{tpu_custom_call.1} parent=23 // pred_fallthru
          _
        %s401 = sld [smem:[#allocation7]]
        %v402 = vstv %s401
        %s403 = sld [smem:[#allocation7 + $0x1]]
        %v404 = vstv %s403
        %s405 = sld [smem:[#allocation7 + $0x2]]
        %v406 = vstv %s405
        %v407 = vld [vmem:[#allocation2] sm:$0xff]
        %s408 = sld [smem:[#allocation6]]
        %v409 = vstv %s408
        %v410 = vmul.f32 %v409, %v407
        %v411 = vadd.f32 %v402, %v410
        %s412 = sld [smem:[#allocation6 + $0x24]]
        %v413 = vstv %s412
        %v414 = vmul.f32 %v413, %v407
        %v415 = vadd.f32 %v404, %v414
        %s416 = sld [smem:[#allocation6 + $0x48]]
        %v417 = vstv %s416
        %v418 = vmul.f32 %v417, %v407
        %v419 = vadd.f32 %v406, %v418
        %s420 = sld [smem:[#allocation6 + $0x1]]
        %v421 = vstv %s420
        %v422 = vmul.f32 %v421, %v407
        %424 = vrot.lane.b32.xlu0 %v422, 127
        %v425 = vpop.permute.xlu0 %424
        %v427 = vadd.f32 %v411, %v425
        %s428 = sld [smem:[#allocation6 + $0x25]]
        %v429 = vstv %s428
        %v430 = vmul.f32 %v429, %v407
        %432 = vrot.lane.b32.xlu0 %v430, 127
        %v433 = vpop.permute.xlu0 %432
        %v435 = vadd.f32 %v415, %v433
        %s436 = sld [smem:[#allocation6 + $0x49]]
        %v437 = vstv %s436
        %v438 = vmul.f32 %v437, %v407
        %440 = vrot.lane.b32.xlu0 %v438, 127
        %v441 = vpop.permute.xlu0 %440
        %v443 = vadd.f32 %v419, %v441
        %s444 = sld [smem:[#allocation6 + $0x2]]
        %v445 = vstv %s444
        %v446 = vmul.f32 %v445, %v407
        %448 = vrot.lane.b32.xlu0 %v446, 126
        %v449 = vpop.permute.xlu0 %448
        %v451 = vadd.f32 %v427, %v449
        %s452 = sld [smem:[#allocation6 + $0x26]]
        %v453 = vstv %s452
        %v454 = vmul.f32 %v453, %v407
        %456 = vrot.lane.b32.xlu0 %v454, 126
        %v457 = vpop.permute.xlu0 %456
        %v459 = vadd.f32 %v435, %v457
        %s460 = sld [smem:[#allocation6 + $0x4a]]
        %v461 = vstv %s460
        %v462 = vmul.f32 %v461, %v407
        %464 = vrot.lane.b32.xlu0 %v462, 126
        %v465 = vpop.permute.xlu0 %464
        %v467 = vadd.f32 %v443, %v465
        %v468 = vld [vmem:[#allocation2 + $0x1] sm:$0xff]
        %s469 = sld [smem:[#allocation6 + $0x3]]
        %v470 = vstv %s469
        %v471 = vmul.f32 %v470, %v468
        %v472 = vadd.f32 %v451, %v471
        %s473 = sld [smem:[#allocation6 + $0x27]]
        %v474 = vstv %s473
        %v475 = vmul.f32 %v474, %v468
        %v476 = vadd.f32 %v459, %v475
        %s477 = sld [smem:[#allocation6 + $0x4b]]
        %v478 = vstv %s477
        %v479 = vmul.f32 %v478, %v468
        %v480 = vadd.f32 %v467, %v479
        %s481 = sld [smem:[#allocation6 + $0x4]]
        %v482 = vstv %s481
        %v483 = vmul.f32 %v482, %v468
        %485 = vrot.lane.b32.xlu0 %v483, 127
        %v486 = vpop.permute.xlu0 %485
        %v488 = vadd.f32 %v472, %v486
        %s489 = sld [smem:[#allocation6 + $0x28]]
        %v490 = vstv %s489
        %v491 = vmul.f32 %v490, %v468
        %493 = vrot.lane.b32.xlu0 %v491, 127
        %v494 = vpop.permute.xlu0 %493
        %v496 = vadd.f32 %v476, %v494
        %s497 = sld [smem:[#allocation6 + $0x4c]]
        %v498 = vstv %s497
        %v499 = vmul.f32 %v498, %v468
        %501 = vrot.lane.b32.xlu0 %v499, 127
        %v502 = vpop.permute.xlu0 %501
        %v504 = vadd.f32 %v480, %v502
        %s505 = sld [smem:[#allocation6 + $0x5]]
        %v506 = vstv %s505
        %v507 = vmul.f32 %v506, %v468
        %509 = vrot.lane.b32.xlu0 %v507, 126
        %v510 = vpop.permute.xlu0 %509
        %v512 = vadd.f32 %v488, %v510
        %s513 = sld [smem:[#allocation6 + $0x29]]
        %v514 = vstv %s513
        %v515 = vmul.f32 %v514, %v468
        %517 = vrot.lane.b32.xlu0 %v515, 126
        %v518 = vpop.permute.xlu0 %517
        %v520 = vadd.f32 %v496, %v518
        %s521 = sld [smem:[#allocation6 + $0x4d]]
        %v522 = vstv %s521
        %v523 = vmul.f32 %v522, %v468
        %525 = vrot.lane.b32.xlu0 %v523, 126
        %v526 = vpop.permute.xlu0 %525
        %v528 = vadd.f32 %v504, %v526
        %v529 = vld [vmem:[#allocation2 + $0x2] sm:$0xff]
        %s530 = sld [smem:[#allocation6 + $0x6]]
        %v531 = vstv %s530
        %v532 = vmul.f32 %v531, %v529
        %v533 = vadd.f32 %v512, %v532
        %s534 = sld [smem:[#allocation6 + $0x2a]]
        %v535 = vstv %s534
        %v536 = vmul.f32 %v535, %v529
        %v537 = vadd.f32 %v520, %v536
        %s538 = sld [smem:[#allocation6 + $0x4e]]
        %v539 = vstv %s538
        %v540 = vmul.f32 %v539, %v529
        %v541 = vadd.f32 %v528, %v540
        %s542 = sld [smem:[#allocation6 + $0x7]]
        %v543 = vstv %s542
        %v544 = vmul.f32 %v543, %v529
        %546 = vrot.lane.b32.xlu0 %v544, 127
        %v547 = vpop.permute.xlu0 %546
        %v549 = vadd.f32 %v533, %v547
        %s550 = sld [smem:[#allocation6 + $0x2b]]
        %v551 = vstv %s550
        %v552 = vmul.f32 %v551, %v529
        %554 = vrot.lane.b32.xlu0 %v552, 127
        %v555 = vpop.permute.xlu0 %554
        %v557 = vadd.f32 %v537, %v555
        %s558 = sld [smem:[#allocation6 + $0x4f]]
        %v559 = vstv %s558
        %v560 = vmul.f32 %v559, %v529
        %562 = vrot.lane.b32.xlu0 %v560, 127
        %v563 = vpop.permute.xlu0 %562
        %v565 = vadd.f32 %v541, %v563
        %s566 = sld [smem:[#allocation6 + $0x8]]
        %v567 = vstv %s566
        %v568 = vmul.f32 %v567, %v529
        %570 = vrot.lane.b32.xlu0 %v568, 126
        %v571 = vpop.permute.xlu0 %570
        %v573 = vadd.f32 %v549, %v571
        %s574 = sld [smem:[#allocation6 + $0x2c]]
        %v575 = vstv %s574
        %v576 = vmul.f32 %v575, %v529
        %578 = vrot.lane.b32.xlu0 %v576, 126
        %v579 = vpop.permute.xlu0 %578
        %v581 = vadd.f32 %v557, %v579
        %s582 = sld [smem:[#allocation6 + $0x50]]
        %v583 = vstv %s582
        %v584 = vmul.f32 %v583, %v529
        %586 = vrot.lane.b32.xlu0 %v584, 126
        %v587 = vpop.permute.xlu0 %586
        %v589 = vadd.f32 %v565, %v587
        %v590 = vld [vmem:[%s219] sm:$0xff]
        %s591 = sld [smem:[#allocation6 + $0x9]]
        %v592 = vstv %s591
        %v593 = vmul.f32 %v592, %v590
        %v594 = vadd.f32 %v573, %v593
        %s595 = sld [smem:[#allocation6 + $0x2d]]
        %v596 = vstv %s595
        %v597 = vmul.f32 %v596, %v590
        %v598 = vadd.f32 %v581, %v597
        %s599 = sld [smem:[#allocation6 + $0x51]]
        %v600 = vstv %s599
        %v601 = vmul.f32 %v600, %v590
        %v602 = vadd.f32 %v589, %v601
        %s603 = sld [smem:[#allocation6 + $0xa]]
        %v604 = vstv %s603
        %v605 = vmul.f32 %v604, %v590
        %607 = vrot.lane.b32.xlu0 %v605, 127
        %v608 = vpop.permute.xlu0 %607
        %v610 = vadd.f32 %v594, %v608
        %s611 = sld [smem:[#allocation6 + $0x2e]]
        %v612 = vstv %s611
        %v613 = vmul.f32 %v612, %v590
        %615 = vrot.lane.b32.xlu0 %v613, 127
        %v616 = vpop.permute.xlu0 %615
        %v618 = vadd.f32 %v598, %v616
        %s619 = sld [smem:[#allocation6 + $0x52]]
        %v620 = vstv %s619
        %v621 = vmul.f32 %v620, %v590
        %623 = vrot.lane.b32.xlu0 %v621, 127
        %v624 = vpop.permute.xlu0 %623
        %v626 = vadd.f32 %v602, %v624
        %s627 = sld [smem:[#allocation6 + $0xb]]
        %v628 = vstv %s627
        %v629 = vmul.f32 %v628, %v590
        %631 = vrot.lane.b32.xlu0 %v629, 126
        %v632 = vpop.permute.xlu0 %631
        %v634 = vadd.f32 %v610, %v632
        %s635 = sld [smem:[#allocation6 + $0x2f]]
        %v636 = vstv %s635
        %v637 = vmul.f32 %v636, %v590
        %639 = vrot.lane.b32.xlu0 %v637, 126
        %v640 = vpop.permute.xlu0 %639
        %v642 = vadd.f32 %v618, %v640
        %s643 = sld [smem:[#allocation6 + $0x53]]
        %v644 = vstv %s643
        %v645 = vmul.f32 %v644, %v590
        %647 = vrot.lane.b32.xlu0 %v645, 126
        %v648 = vpop.permute.xlu0 %647
        %v650 = vadd.f32 %v626, %v648
        %v651 = vld [vmem:[%s219 + $0x1] sm:$0xff]
        %s652 = sld [smem:[#allocation6 + $0xc]]
        %v653 = vstv %s652
        %v654 = vmul.f32 %v653, %v651
        %v655 = vadd.f32 %v634, %v654
        %s656 = sld [smem:[#allocation6 + $0x30]]
        %v657 = vstv %s656
        %v658 = vmul.f32 %v657, %v651
        %v659 = vadd.f32 %v642, %v658
        %s660 = sld [smem:[#allocation6 + $0x54]]
        %v661 = vstv %s660
        %v662 = vmul.f32 %v661, %v651
        %v663 = vadd.f32 %v650, %v662
        %s664 = sld [smem:[#allocation6 + $0xd]]
        %v665 = vstv %s664
        %v666 = vmul.f32 %v665, %v651
        %668 = vrot.lane.b32.xlu0 %v666, 127
        %v669 = vpop.permute.xlu0 %668
        %v671 = vadd.f32 %v655, %v669
        %s672 = sld [smem:[#allocation6 + $0x31]]
        %v673 = vstv %s672
        %v674 = vmul.f32 %v673, %v651
        %676 = vrot.lane.b32.xlu0 %v674, 127
        %v677 = vpop.permute.xlu0 %676
        %v679 = vadd.f32 %v659, %v677
        %s680 = sld [smem:[#allocation6 + $0x55]]
        %v681 = vstv %s680
        %v682 = vmul.f32 %v681, %v651
        %684 = vrot.lane.b32.xlu0 %v682, 127
        %v685 = vpop.permute.xlu0 %684
        %v687 = vadd.f32 %v663, %v685
        %s688 = sld [smem:[#allocation6 + $0xe]]
        %v689 = vstv %s688
        %v690 = vmul.f32 %v689, %v651
        %692 = vrot.lane.b32.xlu0 %v690, 126
        %v693 = vpop.permute.xlu0 %692
        %v695 = vadd.f32 %v671, %v693
        %s696 = sld [smem:[#allocation6 + $0x32]]
        %v697 = vstv %s696
        %v698 = vmul.f32 %v697, %v651
        %700 = vrot.lane.b32.xlu0 %v698, 126
        %v701 = vpop.permute.xlu0 %700
        %v703 = vadd.f32 %v679, %v701
        %s704 = sld [smem:[#allocation6 + $0x56]]
        %v705 = vstv %s704
        %v706 = vmul.f32 %v705, %v651
        %708 = vrot.lane.b32.xlu0 %v706, 126
        %v709 = vpop.permute.xlu0 %708
        %v711 = vadd.f32 %v687, %v709
        %v712 = vld [vmem:[%s219 + $0x2] sm:$0xff]
        %s713 = sld [smem:[#allocation6 + $0xf]]
        %v714 = vstv %s713
        %v715 = vmul.f32 %v714, %v712
        %v716 = vadd.f32 %v695, %v715
        %s717 = sld [smem:[#allocation6 + $0x33]]
        %v718 = vstv %s717
        %v719 = vmul.f32 %v718, %v712
        %v720 = vadd.f32 %v703, %v719
        %s721 = sld [smem:[#allocation6 + $0x57]]
        %v722 = vstv %s721
        %v723 = vmul.f32 %v722, %v712
        %v724 = vadd.f32 %v711, %v723
        %s725 = sld [smem:[#allocation6 + $0x10]]
        %v726 = vstv %s725
        %v727 = vmul.f32 %v726, %v712
        %729 = vrot.lane.b32.xlu0 %v727, 127
        %v730 = vpop.permute.xlu0 %729
        %v732 = vadd.f32 %v716, %v730
        %s733 = sld [smem:[#allocation6 + $0x34]]
        %v734 = vstv %s733
        %v735 = vmul.f32 %v734, %v712
        %737 = vrot.lane.b32.xlu0 %v735, 127
        %v738 = vpop.permute.xlu0 %737
        %v740 = vadd.f32 %v720, %v738
        %s741 = sld [smem:[#allocation6 + $0x58]]
        %v742 = vstv %s741
        %v743 = vmul.f32 %v742, %v712
        %745 = vrot.lane.b32.xlu0 %v743, 127
        %v746 = vpop.permute.xlu0 %745
        %v748 = vadd.f32 %v724, %v746
        %s749 = sld [smem:[#allocation6 + $0x11]]
        %v750 = vstv %s749
        %v751 = vmul.f32 %v750, %v712
        %753 = vrot.lane.b32.xlu0 %v751, 126
        %v754 = vpop.permute.xlu0 %753
        %v756 = vadd.f32 %v732, %v754
        %s757 = sld [smem:[#allocation6 + $0x35]]
        %v758 = vstv %s757
        %v759 = vmul.f32 %v758, %v712
        %761 = vrot.lane.b32.xlu0 %v759, 126
        %v762 = vpop.permute.xlu0 %761
        %v764 = vadd.f32 %v740, %v762
        %s765 = sld [smem:[#allocation6 + $0x59]]
        %v766 = vstv %s765
        %v767 = vmul.f32 %v766, %v712
        %769 = vrot.lane.b32.xlu0 %v767, 126
        %v770 = vpop.permute.xlu0 %769
        %v772 = vadd.f32 %v748, %v770
        %v773 = vld [vmem:[%s235] sm:$0xff]
        %s774 = sld [smem:[#allocation6 + $0x12]]
        %v775 = vstv %s774
        %v776 = vmul.f32 %v775, %v773
        %v777 = vadd.f32 %v756, %v776
        %s778 = sld [smem:[#allocation6 + $0x36]]
        %v779 = vstv %s778
        %v780 = vmul.f32 %v779, %v773
        %v781 = vadd.f32 %v764, %v780
        %s782 = sld [smem:[#allocation6 + $0x5a]]
        %v783 = vstv %s782
        %v784 = vmul.f32 %v783, %v773
        %v785 = vadd.f32 %v772, %v784
        %s786 = sld [smem:[#allocation6 + $0x13]]
        %v787 = vstv %s786
        %v788 = vmul.f32 %v787, %v773
        %790 = vrot.lane.b32.xlu0 %v788, 127
        %v791 = vpop.permute.xlu0 %790
        %v793 = vadd.f32 %v777, %v791
        %s794 = sld [smem:[#allocation6 + $0x37]]
        %v795 = vstv %s794
        %v796 = vmul.f32 %v795, %v773
        %798 = vrot.lane.b32.xlu0 %v796, 127
        %v799 = vpop.permute.xlu0 %798
        %v801 = vadd.f32 %v781, %v799
        %s802 = sld [smem:[#allocation6 + $0x5b]]
        %v803 = vstv %s802
        %v804 = vmul.f32 %v803, %v773
        %806 = vrot.lane.b32.xlu0 %v804, 127
        %v807 = vpop.permute.xlu0 %806
        %v809 = vadd.f32 %v785, %v807
        %s810 = sld [smem:[#allocation6 + $0x14]]
        %v811 = vstv %s810
        %v812 = vmul.f32 %v811, %v773
        %814 = vrot.lane.b32.xlu0 %v812, 126
        %v815 = vpop.permute.xlu0 %814
        %v817 = vadd.f32 %v793, %v815
        %s818 = sld [smem:[#allocation6 + $0x38]]
        %v819 = vstv %s818
        %v820 = vmul.f32 %v819, %v773
        %822 = vrot.lane.b32.xlu0 %v820, 126
        %v823 = vpop.permute.xlu0 %822
        %v825 = vadd.f32 %v801, %v823
        %s826 = sld [smem:[#allocation6 + $0x5c]]
        %v827 = vstv %s826
        %v828 = vmul.f32 %v827, %v773
        %830 = vrot.lane.b32.xlu0 %v828, 126
        %v831 = vpop.permute.xlu0 %830
        %v833 = vadd.f32 %v809, %v831
        %v834 = vld [vmem:[%s235 + $0x1] sm:$0xff]
        %s835 = sld [smem:[#allocation6 + $0x15]]
        %v836 = vstv %s835
        %v837 = vmul.f32 %v836, %v834
        %v838 = vadd.f32 %v817, %v837
        %s839 = sld [smem:[#allocation6 + $0x39]]
        %v840 = vstv %s839
        %v841 = vmul.f32 %v840, %v834
        %v842 = vadd.f32 %v825, %v841
        %s843 = sld [smem:[#allocation6 + $0x5d]]
        %v844 = vstv %s843
        %v845 = vmul.f32 %v844, %v834
        %v846 = vadd.f32 %v833, %v845
        %s847 = sld [smem:[#allocation6 + $0x16]]
        %v848 = vstv %s847
        %v849 = vmul.f32 %v848, %v834
        %851 = vrot.lane.b32.xlu0 %v849, 127
        %v852 = vpop.permute.xlu0 %851
        %v854 = vadd.f32 %v838, %v852
        %s855 = sld [smem:[#allocation6 + $0x3a]]
        %v856 = vstv %s855
        %v857 = vmul.f32 %v856, %v834
        %859 = vrot.lane.b32.xlu0 %v857, 127
        %v860 = vpop.permute.xlu0 %859
        %v862 = vadd.f32 %v842, %v860
        %s863 = sld [smem:[#allocation6 + $0x5e]]
        %v864 = vstv %s863
        %v865 = vmul.f32 %v864, %v834
        %867 = vrot.lane.b32.xlu0 %v865, 127
        %v868 = vpop.permute.xlu0 %867
        %v870 = vadd.f32 %v846, %v868
        %s871 = sld [smem:[#allocation6 + $0x17]]
        %v872 = vstv %s871
        %v873 = vmul.f32 %v872, %v834
        %875 = vrot.lane.b32.xlu0 %v873, 126
        %v876 = vpop.permute.xlu0 %875
        %v878 = vadd.f32 %v854, %v876
        %s879 = sld [smem:[#allocation6 + $0x3b]]
        %v880 = vstv %s879
        %v881 = vmul.f32 %v880, %v834
        %883 = vrot.lane.b32.xlu0 %v881, 126
        %v884 = vpop.permute.xlu0 %883
        %v886 = vadd.f32 %v862, %v884
        %s887 = sld [smem:[#allocation6 + $0x5f]]
        %v888 = vstv %s887
        %v889 = vmul.f32 %v888, %v834
        %891 = vrot.lane.b32.xlu0 %v889, 126
        %v892 = vpop.permute.xlu0 %891
        %v894 = vadd.f32 %v870, %v892
        %v895 = vld [vmem:[%s235 + $0x2] sm:$0xff]
        %s896 = sld [smem:[#allocation6 + $0x18]]
        %v897 = vstv %s896
        %v898 = vmul.f32 %v897, %v895
        %v899 = vadd.f32 %v878, %v898
        %s900 = sld [smem:[#allocation6 + $0x3c]]
        %v901 = vstv %s900
        %v902 = vmul.f32 %v901, %v895
        %v903 = vadd.f32 %v886, %v902
        %s904 = sld [smem:[#allocation6 + $0x60]]
        %v905 = vstv %s904
        %v906 = vmul.f32 %v905, %v895
        %v907 = vadd.f32 %v894, %v906
        %s908 = sld [smem:[#allocation6 + $0x19]]
        %v909 = vstv %s908
        %v910 = vmul.f32 %v909, %v895
        %912 = vrot.lane.b32.xlu0 %v910, 127
        %v913 = vpop.permute.xlu0 %912
        %v915 = vadd.f32 %v899, %v913
        %s916 = sld [smem:[#allocation6 + $0x3d]]
        %v917 = vstv %s916
        %v918 = vmul.f32 %v917, %v895
        %920 = vrot.lane.b32.xlu0 %v918, 127
        %v921 = vpop.permute.xlu0 %920
        %v923 = vadd.f32 %v903, %v921
        %s924 = sld [smem:[#allocation6 + $0x61]]
        %v925 = vstv %s924
        %v926 = vmul.f32 %v925, %v895
        %928 = vrot.lane.b32.xlu0 %v926, 127
        %v929 = vpop.permute.xlu0 %928
        %v931 = vadd.f32 %v907, %v929
        %s932 = sld [smem:[#allocation6 + $0x1a]]
        %v933 = vstv %s932
        %v934 = vmul.f32 %v933, %v895
        %936 = vrot.lane.b32.xlu0 %v934, 126
        %v937 = vpop.permute.xlu0 %936
        %v939 = vadd.f32 %v915, %v937
        %s940 = sld [smem:[#allocation6 + $0x3e]]
        %v941 = vstv %s940
        %v942 = vmul.f32 %v941, %v895
        %944 = vrot.lane.b32.xlu0 %v942, 126
        %v945 = vpop.permute.xlu0 %944
        %v947 = vadd.f32 %v923, %v945
        %s948 = sld [smem:[#allocation6 + $0x62]]
        %v949 = vstv %s948
        %v950 = vmul.f32 %v949, %v895
        %952 = vrot.lane.b32.xlu0 %v950, 126
        %v953 = vpop.permute.xlu0 %952
        %v955 = vadd.f32 %v931, %v953
        %v956 = vld [vmem:[%s251] sm:$0xff]
        %s957 = sld [smem:[#allocation6 + $0x1b]]
        %v958 = vstv %s957
        %v959 = vmul.f32 %v958, %v956
        %v960 = vadd.f32 %v939, %v959
        %s961 = sld [smem:[#allocation6 + $0x3f]]
        %v962 = vstv %s961
        %v963 = vmul.f32 %v962, %v956
        %v964 = vadd.f32 %v947, %v963
        %s965 = sld [smem:[#allocation6 + $0x63]]
        %v966 = vstv %s965
        %v967 = vmul.f32 %v966, %v956
        %v968 = vadd.f32 %v955, %v967
        %s969 = sld [smem:[#allocation6 + $0x1c]]
        %v970 = vstv %s969
        %v971 = vmul.f32 %v970, %v956
        %973 = vrot.lane.b32.xlu0 %v971, 127
        %v974 = vpop.permute.xlu0 %973
        %v976 = vadd.f32 %v960, %v974
        %s977 = sld [smem:[#allocation6 + $0x40]]
        %v978 = vstv %s977
        %v979 = vmul.f32 %v978, %v956
        %981 = vrot.lane.b32.xlu0 %v979, 127
        %v982 = vpop.permute.xlu0 %981
        %v984 = vadd.f32 %v964, %v982
        %s985 = sld [smem:[#allocation6 + $0x64]]
        %v986 = vstv %s985
        %v987 = vmul.f32 %v986, %v956
        %989 = vrot.lane.b32.xlu0 %v987, 127
        %v990 = vpop.permute.xlu0 %989
        %v992 = vadd.f32 %v968, %v990
        %s993 = sld [smem:[#allocation6 + $0x1d]]
        %v994 = vstv %s993
        %v995 = vmul.f32 %v994, %v956
        %997 = vrot.lane.b32.xlu0 %v995, 126
        %v998 = vpop.permute.xlu0 %997
        %v1000 = vadd.f32 %v976, %v998
        %s1001 = sld [smem:[#allocation6 + $0x41]]
        %v1002 = vstv %s1001
        %v1003 = vmul.f32 %v1002, %v956
        %1005 = vrot.lane.b32.xlu0 %v1003, 126
        %v1006 = vpop.permute.xlu0 %1005
        %v1008 = vadd.f32 %v984, %v1006
        %s1009 = sld [smem:[#allocation6 + $0x65]]
        %v1010 = vstv %s1009
        %v1011 = vmul.f32 %v1010, %v956
        %1013 = vrot.lane.b32.xlu0 %v1011, 126
        %v1014 = vpop.permute.xlu0 %1013
        %v1016 = vadd.f32 %v992, %v1014
        %v1017 = vld [vmem:[%s251 + $0x1] sm:$0xff]
        %s1018 = sld [smem:[#allocation6 + $0x1e]]
        %v1019 = vstv %s1018
        %v1020 = vmul.f32 %v1019, %v1017
        %v1021 = vadd.f32 %v1000, %v1020
        %s1022 = sld [smem:[#allocation6 + $0x42]]
        %v1023 = vstv %s1022
        %v1024 = vmul.f32 %v1023, %v1017
        %v1025 = vadd.f32 %v1008, %v1024
        %s1026 = sld [smem:[#allocation6 + $0x66]]
        %v1027 = vstv %s1026
        %v1028 = vmul.f32 %v1027, %v1017
        %v1029 = vadd.f32 %v1016, %v1028
        %s1030 = sld [smem:[#allocation6 + $0x1f]]
        %v1031 = vstv %s1030
        %v1032 = vmul.f32 %v1031, %v1017
        %1034 = vrot.lane.b32.xlu0 %v1032, 127
        %v1035 = vpop.permute.xlu0 %1034
        %v1037 = vadd.f32 %v1021, %v1035
        %s1038 = sld [smem:[#allocation6 + $0x43]]
        %v1039 = vstv %s1038
        %v1040 = vmul.f32 %v1039, %v1017
        %1042 = vrot.lane.b32.xlu0 %v1040, 127
        %v1043 = vpop.permute.xlu0 %1042
        %v1045 = vadd.f32 %v1025, %v1043
        %s1046 = sld [smem:[#allocation6 + $0x67]]
        %v1047 = vstv %s1046
        %v1048 = vmul.f32 %v1047, %v1017
        %1050 = vrot.lane.b32.xlu0 %v1048, 127
        %v1051 = vpop.permute.xlu0 %1050
        %v1053 = vadd.f32 %v1029, %v1051
        %s1054 = sld [smem:[#allocation6 + $0x20]]
        %v1055 = vstv %s1054
        %v1056 = vmul.f32 %v1055, %v1017
        %1058 = vrot.lane.b32.xlu0 %v1056, 126
        %v1059 = vpop.permute.xlu0 %1058
        %v1061 = vadd.f32 %v1037, %v1059
        %s1062 = sld [smem:[#allocation6 + $0x44]]
        %v1063 = vstv %s1062
        %v1064 = vmul.f32 %v1063, %v1017
        %1066 = vrot.lane.b32.xlu0 %v1064, 126
        %v1067 = vpop.permute.xlu0 %1066
        %v1069 = vadd.f32 %v1045, %v1067
        %s1070 = sld [smem:[#allocation6 + $0x68]]
        %v1071 = vstv %s1070
        %v1072 = vmul.f32 %v1071, %v1017
        %1074 = vrot.lane.b32.xlu0 %v1072, 126
        %v1075 = vpop.permute.xlu0 %1074
        %v1077 = vadd.f32 %v1053, %v1075
        %v1078 = vld [vmem:[%s251 + $0x2] sm:$0xff]
        %s1079 = sld [smem:[#allocation6 + $0x21]]
        %v1080 = vstv %s1079
        %v1081 = vmul.f32 %v1080, %v1078
        %v1082 = vadd.f32 %v1061, %v1081
        %s1083 = sld [smem:[#allocation6 + $0x45]]
        %v1084 = vstv %s1083
        %v1085 = vmul.f32 %v1084, %v1078
        %v1086 = vadd.f32 %v1069, %v1085
        %s1087 = sld [smem:[#allocation6 + $0x69]]
        %v1088 = vstv %s1087
        %v1089 = vmul.f32 %v1088, %v1078
        %v1090 = vadd.f32 %v1077, %v1089
        %s1091 = sld [smem:[#allocation6 + $0x22]]
        %v1092 = vstv %s1091
        %v1093 = vmul.f32 %v1092, %v1078
        %1095 = vrot.lane.b32.xlu0 %v1093, 127
        %v1096 = vpop.permute.xlu0 %1095
        %v1098 = vadd.f32 %v1082, %v1096
        %s1099 = sld [smem:[#allocation6 + $0x46]]
        %v1100 = vstv %s1099
        %v1101 = vmul.f32 %v1100, %v1078
        %1103 = vrot.lane.b32.xlu0 %v1101, 127
        %v1104 = vpop.permute.xlu0 %1103
        %v1106 = vadd.f32 %v1086, %v1104
        %s1107 = sld [smem:[#allocation6 + $0x6a]]
        %v1108 = vstv %s1107
        %v1109 = vmul.f32 %v1108, %v1078
        %1111 = vrot.lane.b32.xlu0 %v1109, 127
        %v1112 = vpop.permute.xlu0 %1111
        %v1114 = vadd.f32 %v1090, %v1112
        %s1115 = sld [smem:[#allocation6 + $0x23]]
        %v1116 = vstv %s1115
        %v1117 = vmul.f32 %v1116, %v1078
        %1119 = vrot.lane.b32.xlu0 %v1117, 126
        %v1120 = vpop.permute.xlu0 %1119
        %v1122 = vadd.f32 %v1098, %v1120
        %s1123 = sld [smem:[#allocation6 + $0x47]]
        %v1124 = vstv %s1123
        %v1125 = vmul.f32 %v1124, %v1078
        %1127 = vrot.lane.b32.xlu0 %v1125, 126
        %v1128 = vpop.permute.xlu0 %1127
        %v1130 = vadd.f32 %v1106, %v1128
        %s1131 = sld [smem:[#allocation6 + $0x6b]]
        %v1132 = vstv %s1131
        %v1133 = vmul.f32 %v1132, %v1078
        %1135 = vrot.lane.b32.xlu0 %v1133, 126
        %v1136 = vpop.permute.xlu0 %1135
        %v1138 = vadd.f32 %v1114, %v1136
        %vm1139 = vcmask 130048
        %1140 = vst.msk [vmem:[%s168] sm:$0xff] %vm1139, %v1122
        %s1141 = scalar_lea.vmem %s168, 8 [#allocation11]
        %1142 = vst.msk [vmem:[%s1141] sm:$0xff] %vm1139, %v1130
        %s1143 = scalar_lea.vmem %s168, 16 [#allocation11]
        %1144 = vst.msk [vmem:[%s1143] sm:$0xff] %vm1139, %v1138
        %s1145 = sand.u32 %s86, 1
        %s1146 = scalar_lea.sflag [#allocation10], %s1145
        %s1147 = sand.u32 %s86, 1
        %s1148 = smul.addr %s1147, 24
        %s1149 = scalar_lea.vmem [#allocation11], %s1148
        // Predicated region
        $region45: #{tpu_custom_call.1} parent=23 // pred_check
          %p1150 = pneg %p96
        $region46: #{tpu_custom_call.1} parent=23 // pred_check_branch
          %1152 = sbr.rel (%p1150) target = $region48
        $region47: #{tpu_custom_call.1} parent=23 // pred_region
          %s1154 = ssub.s32 384, 384
          %1155 = vsyncadd %s1146, %s1154
          %s1156 = smul.addr %s42, 6
          %s1157 = sadd.s32 %s43, %s1156
          %s1158 = smul.addr %s1157, 128
          %s1159 = scalar_lea.hbm %s5, %s1158
          %s1160 = sshll.u32 %s1149, 4
          %s1161 = int_to_ptr.vmem [resolvable:$true] %s1160
          %1166 = dma.vmem_to_hbm [thread:$0]  %s1161, 384, %s1159, %s1146, 128, 256, 8
        $region48: #{tpu_custom_call.1} parent=23 // pred_fallthru
          _
      $region24: #{tpu_custom_call.1} parent=5 // pred_fallthru
        _
      %p1167 = scmp.le.s32.totalorder 2, %s33
      // Predicated region
      $region49: #{tpu_custom_call.1} parent=5 // pred_check
        %p1168 = pneg %p1167
      $region50: #{tpu_custom_call.1} parent=5 // pred_check_branch
        %1170 = sbr.rel (%p1168) target = $region52
      $region51: #{tpu_custom_call.1} parent=5 // pred_region
        %s1171 = ssub.s32 %s33, 2
        // Predicated region
        $region53: #{tpu_custom_call.1} parent=51 // pred_check
          %p1172 = pneg %p102
        $region54: #{tpu_custom_call.1} parent=51 // pred_check_branch
          %1174 = sbr.rel (%p1172) target = $region56
        $region55: #{tpu_custom_call.1} parent=51 // pred_region
          %s1175 = sand.u32 %s87, 1
          %s1176 = scalar_lea.sflag [#allocation10], %s1175
          %s1177 = sand.u32 %s87, 1
          %s1178 = smul.addr %s1177, 24
          %s1179 = scalar_lea.vmem [#allocation11], %s1178
          %1180 = dma.done %s1176, 384
        $region56: #{tpu_custom_call.1} parent=51 // pred_fallthru
          _
      $region52: #{tpu_custom_call.1} parent=5 // pred_fallthru
        _
    $region6: #{tpu_custom_call.1} parent=1 // loop_footer
      %s37 = sadd.s32 1, %s33
    $region7: #{tpu_custom_call.1} parent=1 // loop_footer_branch
      %32 = sbr.rel target = $region3
    $region8: #{tpu_custom_call.1} parent=1 // loop_exit
      _
    %1181 = vsyncpa [#allocation9], 1
    %s1182 = scalar_lea.sflag [#allocation9], 1
    %1183 = vsyncpa %s1182, 1
    %1184 = vsyncpa [#allocation10], 1
    %s1185 = scalar_lea.sflag [#allocation10], 1
    %1186 = vsyncpa %s1185, 1

</llo_original>
